<compile_context>
chip_gen: v7x
topology: tpu7x:2x2x1
jax: 0.10.0
libtpu: 0.0.40
codegen_flags: <defaults>
</compile_context>

<pallas_src>
import jax
import jax.numpy as jnp
from jax.experimental import pallas as pl
from jax.experimental.pallas import tpu as pltpu

# Logical dims of the PyTorch MLP.
D_IN, D_H1, D_H2, D_H3, D_OUT = 784, 512, 256, 64, 10


def _mlp_kernel(x_ref, w1_ref, b1_ref, w2_ref, b2_ref,
                w3_ref, b3_ref, w4_ref, b4_ref, o_ref):
    # x arrives f32 straight from HBM; cast to bf16 only for the MXU operand.
    x = x_ref[...].astype(jnp.bfloat16)
    # Layer 1: bf16 x bf16 -> f32 accumulate on the MXU; bias+ReLU in f32 (VPU).
    h = jnp.dot(x, w1_ref[...], preferred_element_type=jnp.float32)
    h = jnp.maximum(h + b1_ref[...], 0.0)
    # Layer 2
    h = jnp.dot(h.astype(jnp.bfloat16), w2_ref[...],
                preferred_element_type=jnp.float32)
    h = jnp.maximum(h + b2_ref[...], 0.0)
    # Layer 3
    h = jnp.dot(h.astype(jnp.bfloat16), w3_ref[...],
                preferred_element_type=jnp.float32)
    h = jnp.maximum(h + b3_ref[...], 0.0)
    # Layer 4 (no activation); narrow (tile, 10) store, masked vst is cheap
    # here since the kernel is MXU/DMA bound on the x stream.
    h = jnp.dot(h.astype(jnp.bfloat16), w4_ref[...],
                preferred_element_type=jnp.float32)
    o_ref[...] = (h + b4_ref[...]).astype(o_ref.dtype)


def _round_up(n, m):
    return ((n + m - 1) // m) * m


def prepare_params(params, compute_dtype=jnp.bfloat16):
    """One-time param prep: weights -> MXU compute dtype, biases -> f32 (1, n)."""
    return [(w.astype(compute_dtype), b.reshape(1, -1).astype(jnp.float32))
            for (w, b) in params]


def mlp_forward(x, prepared_params, *, batch_tile=512):
    """x: [B, 1, 28, 28] or [B, 784].  Returns [B, 10] f32 logits."""
    x2d = x.reshape(-1, D_IN)                  # == torch x.view(-1, 784); no copy
    B = x2d.shape[0]

    # Batch tile: multiple of 16 rows (bf16 sublane packing); small batches get
    # one compact block, big batches are capped so the grid has >=2 parallel
    # steps for dual-TC v7x.
    tile = max(16, min(batch_tile, _round_up(B, 16)))
    if B >= 256:
        tile = min(tile, _round_up(pl.cdiv(B, 2), 16))
    tile = _round_up(tile, 16)
    grid = (pl.cdiv(B, tile),)

    (w1, b1), (w2, b2), (w3, b3), (w4, b4) = prepared_params

    def resident(a):
        # Whole (small) array resident in VMEM; constant index map -> DMA'd once.
        nd = a.ndim
        return pl.BlockSpec(a.shape, lambda *_: (0,) * nd)

    n_mac = D_IN * D_H1 + D_H1 * D_H2 + D_H2 * D_H3 + D_H3 * D_OUT
    cost = pl.CostEstimate(
        flops=2 * B * n_mac,
        transcendentals=0,
        bytes_accessed=(B * D_IN * x2d.dtype.itemsize        # streamed x
                        + n_mac * w1.dtype.itemsize          # bf16 weights
                        + 4 * (D_H1 + D_H2 + D_H3 + D_OUT)   # f32 biases
                        + B * D_OUT * 4),                    # f32 logits
    )

    return pl.pallas_call(
        _mlp_kernel,
        out_shape=jax.ShapeDtypeStruct((B, D_OUT), jnp.float32),
        grid_spec=pltpu.PrefetchScalarGridSpec(
            num_scalar_prefetch=0,
            grid=grid,
            in_specs=[
                pl.BlockSpec((tile, D_IN), lambda i: (i, 0)),   # streamed x tile
                resident(w1), resident(b1),
                resident(w2), resident(b2),
                resident(w3), resident(b3),
                resident(w4), resident(b4),
            ],
            out_specs=pl.BlockSpec((tile, D_OUT), lambda i: (i, 0)),
        ),
        compiler_params=pltpu.CompilerParams(
            dimension_semantics=("parallel",),
            vmem_limit_bytes=32 * 1024 * 1024,   # lets v5e match v6e/v7x tiling
        ),
        cost_estimate=cost,
    )(x2d, w1, b1, w2, b2, w3, b3, w4, b4)


def init_params(key):
    """Deterministic init matching torch.nn.Linear's U(-1/sqrt(fan_in), +...)."""
    dims = [(D_IN, D_H1), (D_H1, D_H2), (D_H2, D_H3), (D_H3, D_OUT)]
    params = []
    for (fan_in, fan_out) in dims:
        key, kw, kb = jax.random.split(key, 3)
        bound = 1.0 / jnp.sqrt(fan_in)
        # weights stored as [in, out] (transpose of torch's [out, in])
        w = jax.random.uniform(kw, (fan_in, fan_out), jnp.float32, -bound, bound)
        b = jax.random.uniform(kb, (1, fan_out), jnp.float32, -bound, bound)
        params.append((w, b))
    return params


def mlp_reference(x, params):
    """Pure-JAX f32 reference for correctness check."""
    h = x.reshape(-1, D_IN)
    (w1, b1), (w2, b2), (w3, b3), (w4, b4) = params
    h = jnp.maximum(h @ w1 + b1, 0.0)
    h = jnp.maximum(h @ w2 + b2, 0.0)
    h = jnp.maximum(h @ w3 + b3, 0.0)
    return h @ w4 + b4


if __name__ == "__main__":
    key = jax.random.PRNGKey(0)
    key, kx1, kx2 = jax.random.split(key, 3)
    params = init_params(key)
    prepared = prepare_params(params)      # one-time bf16 weight prep

    fwd = jax.jit(mlp_forward)

    # Two cases: tiny ragged batch (masked last rows) and a multi-tile batch.
    for name, B, kx in (("small-ragged", 37, kx1), ("multi-tile", 300, kx2)):
        x = jax.random.normal(kx, (B, 1, 28, 28), jnp.float32)  # NCHW MNIST-like
        out = jax.block_until_ready(fwd(x, prepared))
        ref = mlp_reference(x, params)
        assert out.shape == (B, D_OUT), (name, out.shape)
        # bf16 MXU operands with f32 accumulation vs f32 reference.
        assert jnp.allclose(out, ref, atol=2e-2, rtol=2e-2), f"mismatch ({name})"
    print("KERNEL_OK")
</pallas_src>

<mosaic_0001>
module attributes {stable_mosaic.version = 11 : i64} {
  func.func @_mlp_kernel(%arg0: i32, %arg1: memref<48x784xf32, #tpu.memory_space<vmem>>, %arg2: memref<784x512xbf16, #tpu.memory_space<vmem>>, %arg3: memref<1x512xf32, #tpu.memory_space<vmem>>, %arg4: memref<512x256xbf16, #tpu.memory_space<vmem>>, %arg5: memref<1x256xf32, #tpu.memory_space<vmem>>, %arg6: memref<256x64xbf16, #tpu.memory_space<vmem>>, %arg7: memref<1x64xf32, #tpu.memory_space<vmem>>, %arg8: memref<64x10xbf16, #tpu.memory_space<vmem>>, %arg9: memref<1x10xf32, #tpu.memory_space<vmem>>, %arg10: memref<48x10xf32, #tpu.memory_space<vmem>>) attributes {dimension_semantics = [#tpu.dimension_semantics<parallel>], iteration_bounds = array<i64: 1>, scalar_prefetch = 0 : i64, scratch_operands = 0 : i64, tpu.core_type = #tpu.core_type<tc>, window_params = [{transform_indices = @transform_0, window_bounds = array<i64: 48, 784>}, {pipeline_mode = #tpu.pipeline_mode<synchronous>, transform_indices = @transform_1, window_bounds = array<i64: 784, 512>}, {pipeline_mode = #tpu.pipeline_mode<synchronous>, transform_indices = @transform_2, window_bounds = array<i64: 1, 512>}, {pipeline_mode = #tpu.pipeline_mode<synchronous>, transform_indices = @transform_3, window_bounds = array<i64: 512, 256>}, {pipeline_mode = #tpu.pipeline_mode<synchronous>, transform_indices = @transform_4, window_bounds = array<i64: 1, 256>}, {pipeline_mode = #tpu.pipeline_mode<synchronous>, transform_indices = @transform_5, window_bounds = array<i64: 256, 64>}, {pipeline_mode = #tpu.pipeline_mode<synchronous>, transform_indices = @transform_6, window_bounds = array<i64: 1, 64>}, {pipeline_mode = #tpu.pipeline_mode<synchronous>, transform_indices = @transform_7, window_bounds = array<i64: 64, 10>}, {pipeline_mode = #tpu.pipeline_mode<synchronous>, transform_indices = @transform_8, window_bounds = array<i64: 1, 10>}, {transform_indices = @transform_9, window_bounds = array<i64: 48, 10>}]} {
    %c0 = arith.constant 0 : index
    %c0_0 = arith.constant 0 : index
    %0 = vector.load %arg1[%c0, %c0_0] : memref<48x784xf32, #tpu.memory_space<vmem>>, vector<48x784xf32>
    %1 = arith.truncf %0 : vector<48x784xf32> to vector<48x784xbf16>
    %c0_1 = arith.constant 0 : index
    %c0_2 = arith.constant 0 : index
    %2 = vector.load %arg2[%c0_1, %c0_2] : memref<784x512xbf16, #tpu.memory_space<vmem>>, vector<784x512xbf16>
    %cst = arith.constant dense<0.000000e+00> : vector<48x512xf32>
    %3 = tpu.matmul %1, %2, %cst {dimension_numbers = #tpu.dot_dimension_numbers<[1], [0], [0], [1], [0, 0, 1, 1], [], []>} : vector<48x784xbf16>, vector<784x512xbf16>, vector<48x512xf32> -> vector<48x512xf32>
    %c0_3 = arith.constant 0 : index
    %c0_4 = arith.constant 0 : index
    %4 = vector.load %arg3[%c0_3, %c0_4] : memref<1x512xf32, #tpu.memory_space<vmem>>, vector<1x512xf32>
    %5 = vector.broadcast %4 : vector<1x512xf32> to vector<48x512xf32>
    %6 = arith.addf %3, %5 : vector<48x512xf32>
    %cst_5 = arith.constant 0.000000e+00 : f32
    %7 = vector.broadcast %cst_5 : f32 to vector<48x512xf32>
    %8 = arith.maximumf %6, %7 : vector<48x512xf32>
    %9 = arith.truncf %8 : vector<48x512xf32> to vector<48x512xbf16>
    %c0_6 = arith.constant 0 : index
    %c0_7 = arith.constant 0 : index
    %10 = vector.load %arg4[%c0_6, %c0_7] : memref<512x256xbf16, #tpu.memory_space<vmem>>, vector<512x256xbf16>
    %cst_8 = arith.constant dense<0.000000e+00> : vector<48x256xf32>
    %11 = tpu.matmul %9, %10, %cst_8 {dimension_numbers = #tpu.dot_dimension_numbers<[1], [0], [0], [1], [0, 0, 1, 1], [], []>} : vector<48x512xbf16>, vector<512x256xbf16>, vector<48x256xf32> -> vector<48x256xf32>
    %c0_9 = arith.constant 0 : index
    %c0_10 = arith.constant 0 : index
    %12 = vector.load %arg5[%c0_9, %c0_10] : memref<1x256xf32, #tpu.memory_space<vmem>>, vector<1x256xf32>
    %13 = vector.broadcast %12 : vector<1x256xf32> to vector<48x256xf32>
    %14 = arith.addf %11, %13 : vector<48x256xf32>
    %cst_11 = arith.constant 0.000000e+00 : f32
    %15 = vector.broadcast %cst_11 : f32 to vector<48x256xf32>
    %16 = arith.maximumf %14, %15 : vector<48x256xf32>
    %17 = arith.truncf %16 : vector<48x256xf32> to vector<48x256xbf16>
    %c0_12 = arith.constant 0 : index
    %c0_13 = arith.constant 0 : index
    %18 = vector.load %arg6[%c0_12, %c0_13] : memref<256x64xbf16, #tpu.memory_space<vmem>>, vector<256x64xbf16>
    %cst_14 = arith.constant dense<0.000000e+00> : vector<48x64xf32>
    %19 = tpu.matmul %17, %18, %cst_14 {dimension_numbers = #tpu.dot_dimension_numbers<[1], [0], [0], [1], [0, 0, 1, 1], [], []>} : vector<48x256xbf16>, vector<256x64xbf16>, vector<48x64xf32> -> vector<48x64xf32>
    %c0_15 = arith.constant 0 : index
    %c0_16 = arith.constant 0 : index
    %20 = vector.load %arg7[%c0_15, %c0_16] : memref<1x64xf32, #tpu.memory_space<vmem>>, vector<1x64xf32>
    %21 = vector.broadcast %20 : vector<1x64xf32> to vector<48x64xf32>
    %22 = arith.addf %19, %21 : vector<48x64xf32>
    %cst_17 = arith.constant 0.000000e+00 : f32
    %23 = vector.broadcast %cst_17 : f32 to vector<48x64xf32>
    %24 = arith.maximumf %22, %23 : vector<48x64xf32>
    %25 = arith.truncf %24 : vector<48x64xf32> to vector<48x64xbf16>
    %c0_18 = arith.constant 0 : index
    %c0_19 = arith.constant 0 : index
    %26 = vector.load %arg8[%c0_18, %c0_19] : memref<64x10xbf16, #tpu.memory_space<vmem>>, vector<64x10xbf16>
    %cst_20 = arith.constant dense<0.000000e+00> : vector<48x10xf32>
    %27 = tpu.matmul %25, %26, %cst_20 {dimension_numbers = #tpu.dot_dimension_numbers<[1], [0], [0], [1], [0, 0, 1, 1], [], []>} : vector<48x64xbf16>, vector<64x10xbf16>, vector<48x10xf32> -> vector<48x10xf32>
    %c0_21 = arith.constant 0 : index
    %c0_22 = arith.constant 0 : index
    %28 = vector.load %arg9[%c0_21, %c0_22] : memref<1x10xf32, #tpu.memory_space<vmem>>, vector<1x10xf32>
    %29 = vector.broadcast %28 : vector<1x10xf32> to vector<48x10xf32>
    %30 = arith.addf %27, %29 : vector<48x10xf32>
    %c0_23 = arith.constant 0 : index
    %c0_24 = arith.constant 0 : index
    %31 = vector.load %arg10[%c0_23, %c0_24] : memref<48x10xf32, #tpu.memory_space<vmem>>, vector<48x10xf32>
    tpu.vector_store %arg10[%c0_23, %c0_24], %30 {strides = array<i32>} : memref<48x10xf32, #tpu.memory_space<vmem>>, vector<48x10xf32>,
    return
  }
  func.func @transform_0(%arg0: i32) -> (i32, i32) {
    %c0_i32 = arith.constant 0 : i32
    %c0_i32_0 = arith.constant 0 : i32
    return %arg0, %c0_i32 : i32, i32
  }
  func.func @transform_1(%arg0: i32) -> (i32, i32) {
    %c0_i32 = arith.constant 0 : i32
    %c0_i32_0 = arith.constant 0 : i32
    %c0_i32_1 = arith.constant 0 : i32
    return %c0_i32, %c0_i32_0 : i32, i32
  }
  func.func @transform_2(%arg0: i32) -> (i32, i32) {
    %c0_i32 = arith.constant 0 : i32
    %c0_i32_0 = arith.constant 0 : i32
    %c0_i32_1 = arith.constant 0 : i32
    return %c0_i32, %c0_i32_0 : i32, i32
  }
  func.func @transform_3(%arg0: i32) -> (i32, i32) {
    %c0_i32 = arith.constant 0 : i32
    %c0_i32_0 = arith.constant 0 : i32
    %c0_i32_1 = arith.constant 0 : i32
    return %c0_i32, %c0_i32_0 : i32, i32
  }
  func.func @transform_4(%arg0: i32) -> (i32, i32) {
    %c0_i32 = arith.constant 0 : i32
    %c0_i32_0 = arith.constant 0 : i32
    %c0_i32_1 = arith.constant 0 : i32
    return %c0_i32, %c0_i32_0 : i32, i32
  }
  func.func @transform_5(%arg0: i32) -> (i32, i32) {
    %c0_i32 = arith.constant 0 : i32
    %c0_i32_0 = arith.constant 0 : i32
    %c0_i32_1 = arith.constant 0 : i32
    return %c0_i32, %c0_i32_0 : i32, i32
  }
  func.func @transform_6(%arg0: i32) -> (i32, i32) {
    %c0_i32 = arith.constant 0 : i32
    %c0_i32_0 = arith.constant 0 : i32
    %c0_i32_1 = arith.constant 0 : i32
    return %c0_i32, %c0_i32_0 : i32, i32
  }
  func.func @transform_7(%arg0: i32) -> (i32, i32) {
    %c0_i32 = arith.constant 0 : i32
    %c0_i32_0 = arith.constant 0 : i32
    %c0_i32_1 = arith.constant 0 : i32
    return %c0_i32, %c0_i32_0 : i32, i32
  }
  func.func @transform_8(%arg0: i32) -> (i32, i32) {
    %c0_i32 = arith.constant 0 : i32
    %c0_i32_0 = arith.constant 0 : i32
    %c0_i32_1 = arith.constant 0 : i32
    return %c0_i32, %c0_i32_0 : i32, i32
  }
  func.func @transform_9(%arg0: i32) -> (i32, i32) {
    %c0_i32 = arith.constant 0 : i32
    %c0_i32_0 = arith.constant 0 : i32
    return %arg0, %c0_i32 : i32, i32
  }
}

</mosaic_0001>

<llo_original>
// kernel: mlp_forward.1
$region0: #{mlp_forward.1}
  #allocation0 [shape = 'u32[]', space=smem, size = 0x4, offset = 0x4, fixed_abs, tag = 'smem constant byte address 0x4 - core index']
  #allocation1 [shape = 'u32[144,128]{1,0:T(1,128)}', space=vmem, size = 0x12000, scoped, tag = 'internal scratch']
  %s0 = inlined_call_operand.vmem [shape: f32[37,784], index: 0, kind: input, shape index: {}]
  %s1 = inlined_call_operand.hbm [shape: bf16[784,512], index: 1, kind: input, shape index: {}]
  %s2 = inlined_call_operand.vmem [shape: f32[1,512], index: 2, kind: input, shape index: {}]
  %s3 = inlined_call_operand.vmem [shape: bf16[512,256], index: 3, kind: input, shape index: {}]
  %s4 = inlined_call_operand.vmem [shape: f32[1,256], index: 4, kind: input, shape index: {}]
  %s5 = inlined_call_operand.vmem [shape: bf16[256,64], index: 5, kind: input, shape index: {}]
  %s6 = inlined_call_operand.vmem [shape: f32[1,64], index: 6, kind: input, shape index: {}]
  %s7 = inlined_call_operand.vmem [shape: bf16[64,10], index: 7, kind: input, shape index: {}]
  %s8 = inlined_call_operand.vmem [shape: f32[1,10], index: 8, kind: input, shape index: {}]
  %s9 = inlined_call_operand.vmem [shape: f32[37,10], index: 9, kind: output, shape index: {}]
  %s10 = sld [smem:[#allocation0]]
  $region84: #{mlp_forward.1} parent=0
    _
  %s12 = ssub.s32 1, %s10
  %s13 = scalar_select 0, %s12, %s10
  $region1: #{mlp_forward.1} parent=0
    #allocation2 [shape = 'u8[802816]{0}', space=vmem, size = 0xc4000, scoped, tag = 'input window, operand 1, single buffered']
    #allocation3 [shape = 's32[1]{0}', space=sflag, size = 0x4, scoped, tag = 'scoped memory for mlp_forward.1']
    #allocation4 [shape = 'u8[24576]{0}', space=vmem, size = 0x6000, scoped, tag = 'output window, operand 0, single buffered']
    %14 = vsyncpa [#allocation3], 0
    // Predicated region
    $region2: #{mlp_forward.1} parent=1 // pred_check
      _
    $region3: #{mlp_forward.1} parent=1 // pred_check_branch
      %16 = sbr.rel (0) target = $region5
    $region4: #{mlp_forward.1} parent=1 // pred_region
      _
    $region5: #{mlp_forward.1} parent=1 // pred_fallthru
      _
    // Predicated region
    $region6: #{mlp_forward.1} parent=1 // pred_check
      _
    $region7: #{mlp_forward.1} parent=1 // pred_check_branch
      %18 = sbr.rel (0) target = $region9
    $region8: #{mlp_forward.1} parent=1 // pred_region
      %s20 = ssub.s32 25088, 25088
      %21 = vsyncadd [#allocation3], %s20
      %s22 = sshll.u32 [#allocation2], 4
      %s23 = int_to_ptr.vmem [resolvable:$true] %s22
      %28 = dma.hbm_to_vmem [thread:$0]  %s1, 25088, %s23, [#allocation3], 256, 256, 16
    $region9: #{mlp_forward.1} parent=1 // pred_fallthru
      _
    // Predicated region
    $region10: #{mlp_forward.1} parent=1 // pred_check
      _
    $region11: #{mlp_forward.1} parent=1 // pred_check_branch
      %30 = sbr.rel (0) target = $region13
    $region12: #{mlp_forward.1} parent=1 // pred_region
      _
    $region13: #{mlp_forward.1} parent=1 // pred_fallthru
      _
    // Predicated region
    $region14: #{mlp_forward.1} parent=1 // pred_check
      _
    $region15: #{mlp_forward.1} parent=1 // pred_check_branch
      %32 = sbr.rel (0) target = $region17
    $region16: #{mlp_forward.1} parent=1 // pred_region
      _
    $region17: #{mlp_forward.1} parent=1 // pred_fallthru
      _
    // Predicated region
    $region18: #{mlp_forward.1} parent=1 // pred_check
      _
    $region19: #{mlp_forward.1} parent=1 // pred_check_branch
      %34 = sbr.rel (0) target = $region21
    $region20: #{mlp_forward.1} parent=1 // pred_region
      _
    $region21: #{mlp_forward.1} parent=1 // pred_fallthru
      _
    // Predicated region
    $region22: #{mlp_forward.1} parent=1 // pred_check
      _
    $region23: #{mlp_forward.1} parent=1 // pred_check_branch
      %36 = sbr.rel (0) target = $region25
    $region24: #{mlp_forward.1} parent=1 // pred_region
      _
    $region25: #{mlp_forward.1} parent=1 // pred_fallthru
      _
    // Predicated region
    $region26: #{mlp_forward.1} parent=1 // pred_check
      _
    $region27: #{mlp_forward.1} parent=1 // pred_check_branch
      %38 = sbr.rel (0) target = $region29
    $region28: #{mlp_forward.1} parent=1 // pred_region
      _
    $region29: #{mlp_forward.1} parent=1 // pred_fallthru
      _
    // Predicated region
    $region30: #{mlp_forward.1} parent=1 // pred_check
      _
    $region31: #{mlp_forward.1} parent=1 // pred_check_branch
      %40 = sbr.rel (0) target = $region33
    $region32: #{mlp_forward.1} parent=1 // pred_region
      _
    $region33: #{mlp_forward.1} parent=1 // pred_fallthru
      _
    // Predicated region
    $region34: #{mlp_forward.1} parent=1 // pred_check
      _
    $region35: #{mlp_forward.1} parent=1 // pred_check_branch
      %42 = sbr.rel (0) target = $region37
    $region36: #{mlp_forward.1} parent=1 // pred_region
      _
    $region37: #{mlp_forward.1} parent=1 // pred_fallthru
      _
    // Predicated region
    $region38: #{mlp_forward.1} parent=1 // pred_check
      _
    $region39: #{mlp_forward.1} parent=1 // pred_check_branch
      %44 = sbr.rel (0) target = $region41
    $region40: #{mlp_forward.1} parent=1 // pred_region
      %45 = dma.done [#allocation3], 25088
    $region41: #{mlp_forward.1} parent=1 // pred_fallthru
      _
    %v47 = vld [vmem:[%s0] sm:$0xff]
    %v48 = vld [vmem:[%s0 + $0x8] sm:$0xff]
    %v49 = vld [vmem:[%s0 + $0x10] sm:$0xff]
    %v50 = vld [vmem:[%s0 + $0x18] sm:$0xff]
    %v51 = vld [vmem:[%s0 + $0x20] sm:$0xff]
    %v52 = vld [vmem:[%s0 + $0x28] sm:$0xff]
    %v53 = vld [vmem:[%s0 + $0x30] sm:$0xff]
    %v54 = vld [vmem:[%s0 + $0x38] sm:$0xff]
    %v55 = vld [vmem:[%s0 + $0x40] sm:$0xff]
    %v56 = vld [vmem:[%s0 + $0x48] sm:$0xff]
    %v57 = vld [vmem:[%s0 + $0x50] sm:$0xff]
    %v58 = vld [vmem:[%s0 + $0x58] sm:$0xff]
    %v59 = vld [vmem:[%s0 + $0x60] sm:$0xff]
    %v60 = vld [vmem:[%s0 + $0x68] sm:$0xff]
    %v61 = vld [vmem:[%s0 + $0x70] sm:$0xff]
    %v62 = vld [vmem:[%s0 + $0x78] sm:$0xff]
    %v63 = vld [vmem:[%s0 + $0x80] sm:$0xff]
    %v64 = vld [vmem:[%s0 + $0x88] sm:$0xff]
    %v65 = vld [vmem:[%s0 + $0x90] sm:$0xff]
    %v66 = vld [vmem:[%s0 + $0x98] sm:$0xff]
    %v67 = vld [vmem:[%s0 + $0xa0] sm:$0xff]
    %v68 = vld [vmem:[%s0 + $0xa8] sm:$0xff]
    %v69 = vld [vmem:[%s0 + $0xb0] sm:$0xff]
    %v70 = vld [vmem:[%s0 + $0xb8] sm:$0xff]
    %v71 = vld [vmem:[%s0 + $0xc0] sm:$0xff]
    %v72 = vld [vmem:[%s0 + $0xc8] sm:$0xff]
    %v73 = vld [vmem:[%s0 + $0xd0] sm:$0xff]
    %v74 = vld [vmem:[%s0 + $0xd8] sm:$0xff]
    %v75 = vld [vmem:[%s0 + $0xe0] sm:$0xff]
    %v76 = vld [vmem:[%s0 + $0xe8] sm:$0xff]
    %v77 = vld [vmem:[%s0 + $0xf0] sm:$0xff]
    %v78 = vld [vmem:[%s0 + $0xf8] sm:$0xff]
    %v79 = vld [vmem:[%s0 + $0x100] sm:$0xff]
    %v80 = vld [vmem:[%s0 + $0x108] sm:$0xff]
    %v81 = vld [vmem:[%s0 + $0x110] sm:$0xff]
    %v82 = vld [vmem:[%s0 + $0x118] sm:$0xff]
    %v83 = vld [vmem:[%s0 + $0x120] sm:$0xff]
    %v84 = vld [vmem:[%s0 + $0x128] sm:$0xff]
    %v85 = vld [vmem:[%s0 + $0x130] sm:$0xff]
    %v86 = vld [vmem:[%s0 + $0x138] sm:$0xff]
    %v87 = vld [vmem:[%s0 + $0x140] sm:$0xff]
    %v88 = vld [vmem:[%s0 + $0x148] sm:$0xff]
    %v89 = vpack.c.bf16 %v54, %v47
    %v90 = vpack.c.bf16 %v55, %v48
    %v91 = vpack.c.bf16 %v56, %v49
    %v92 = vpack.c.bf16 %v57, %v50
    %v93 = vpack.c.bf16 %v58, %v51
    %v94 = vpack.c.bf16 %v59, %v52
    %v95 = vpack.c.bf16 %v60, %v53
    %v96 = vpack.c.bf16 %v68, %v61
    %v97 = vpack.c.bf16 %v69, %v62
    %v98 = vpack.c.bf16 %v70, %v63
    %v99 = vpack.c.bf16 %v71, %v64
    %v100 = vpack.c.bf16 %v72, %v65
    %v101 = vpack.c.bf16 %v73, %v66
    %v102 = vpack.c.bf16 %v74, %v67
    %v103 = vpack.c.bf16 %v82, %v75
    %v104 = vpack.c.bf16 %v83, %v76
    %v105 = vpack.c.bf16 %v84, %v77
    %v106 = vpack.c.bf16 %v85, %v78
    %v107 = vpack.c.bf16 %v86, %v79
    %v108 = vpack.c.bf16 %v87, %v80
    %v109 = vpack.c.bf16 %v88, %v81
    %v110 = vld [vmem:[#allocation2] sm:$0xff]
    %v111 = vld [vmem:[#allocation2 + $0x8] sm:$0xff]
    %v112 = vld [vmem:[#allocation2 + $0x10] sm:$0xff]
    %v113 = vld [vmem:[#allocation2 + $0x18] sm:$0xff]
    %v114 = vld [vmem:[#allocation2 + $0x20] sm:$0xff]
    %v115 = vld [vmem:[#allocation2 + $0x28] sm:$0xff]
    %v116 = vld [vmem:[#allocation2 + $0x30] sm:$0xff]
    %v117 = vld [vmem:[#allocation2 + $0x38] sm:$0xff]
    %v118 = vld [vmem:[#allocation2 + $0x40] sm:$0xff]
    %v119 = vld [vmem:[#allocation2 + $0x48] sm:$0xff]
    %v120 = vld [vmem:[#allocation2 + $0x50] sm:$0xff]
    %v121 = vld [vmem:[#allocation2 + $0x58] sm:$0xff]
    %v122 = vld [vmem:[#allocation2 + $0x60] sm:$0xff]
    %v123 = vld [vmem:[#allocation2 + $0x68] sm:$0xff]
    %v124 = vld [vmem:[#allocation2 + $0x70] sm:$0xff]
    %v125 = vld [vmem:[#allocation2 + $0x78] sm:$0xff]
    %v126 = vld [vmem:[#allocation2 + $0x80] sm:$0xff]
    %v127 = vld [vmem:[#allocation2 + $0x88] sm:$0xff]
    %v128 = vld [vmem:[#allocation2 + $0x90] sm:$0xff]
    %v129 = vld [vmem:[#allocation2 + $0x98] sm:$0xff]
    %v130 = vld [vmem:[#allocation2 + $0xa0] sm:$0xff]
    %v131 = vld [vmem:[#allocation2 + $0xa8] sm:$0xff]
    %v132 = vld [vmem:[#allocation2 + $0xb0] sm:$0xff]
    %v133 = vld [vmem:[#allocation2 + $0xb8] sm:$0xff]
    %v134 = vld [vmem:[#allocation2 + $0xc0] sm:$0xff]
    %v135 = vld [vmem:[#allocation2 + $0xc8] sm:$0xff]
    %v136 = vld [vmem:[#allocation2 + $0xd0] sm:$0xff]
    %v137 = vld [vmem:[#allocation2 + $0xd8] sm:$0xff]
    %v138 = vld [vmem:[#allocation2 + $0xe0] sm:$0xff]
    %v139 = vld [vmem:[#allocation2 + $0xe8] sm:$0xff]
    %v140 = vld [vmem:[#allocation2 + $0xf0] sm:$0xff]
    %v141 = vld [vmem:[#allocation2 + $0xf8] sm:$0xff]
    %v142 = vld [vmem:[#allocation2 + $0x100] sm:$0xff]
    %v143 = vld [vmem:[#allocation2 + $0x108] sm:$0xff]
    %v144 = vld [vmem:[#allocation2 + $0x110] sm:$0xff]
    %v145 = vld [vmem:[#allocation2 + $0x118] sm:$0xff]
    %v146 = vld [vmem:[#allocation2 + $0x120] sm:$0xff]
    %v147 = vld [vmem:[#allocation2 + $0x128] sm:$0xff]
    %v148 = vld [vmem:[#allocation2 + $0x130] sm:$0xff]
    %v149 = vld [vmem:[#allocation2 + $0x138] sm:$0xff]
    %v150 = vld [vmem:[#allocation2 + $0x140] sm:$0xff]
    %v151 = vld [vmem:[#allocation2 + $0x148] sm:$0xff]
    %v152 = vld [vmem:[#allocation2 + $0x150] sm:$0xff]
    %v153 = vld [vmem:[#allocation2 + $0x158] sm:$0xff]
    %v154 = vld [vmem:[#allocation2 + $0x160] sm:$0xff]
    %v155 = vld [vmem:[#allocation2 + $0x168] sm:$0xff]
    %v156 = vld [vmem:[#allocation2 + $0x170] sm:$0xff]
    %v157 = vld [vmem:[#allocation2 + $0x178] sm:$0xff]
    %v158 = vld [vmem:[#allocation2 + $0x180] sm:$0xff]
    %v159 = vld [vmem:[#allocation2 + $0x188] sm:$0xff]
    %v160 = vld [vmem:[#allocation2 + $0x190] sm:$0xff]
    %v161 = vld [vmem:[#allocation2 + $0x198] sm:$0xff]
    %v162 = vld [vmem:[#allocation2 + $0x1a0] sm:$0xff]
    %v163 = vld [vmem:[#allocation2 + $0x1a8] sm:$0xff]
    %v164 = vld [vmem:[#allocation2 + $0x1b0] sm:$0xff]
    %v165 = vld [vmem:[#allocation2 + $0x1b8] sm:$0xff]
    %v166 = vld [vmem:[#allocation2 + $0x1c0] sm:$0xff]
    %v167 = vld [vmem:[#allocation2 + $0x1c8] sm:$0xff]
    %v168 = vld [vmem:[#allocation2 + $0x1d0] sm:$0xff]
    %v169 = vld [vmem:[#allocation2 + $0x1d8] sm:$0xff]
    %v170 = vld [vmem:[#allocation2 + $0x1e0] sm:$0xff]
    %v171 = vld [vmem:[#allocation2 + $0x1e8] sm:$0xff]
    %v172 = vld [vmem:[#allocation2 + $0x1f0] sm:$0xff]
    %v173 = vld [vmem:[#allocation2 + $0x1f8] sm:$0xff]
    %v174 = vld [vmem:[#allocation2 + $0x200] sm:$0xff]
    %v175 = vld [vmem:[#allocation2 + $0x208] sm:$0xff]
    %v176 = vld [vmem:[#allocation2 + $0x210] sm:$0xff]
    %v177 = vld [vmem:[#allocation2 + $0x218] sm:$0xff]
    %v178 = vld [vmem:[#allocation2 + $0x220] sm:$0xff]
    %v179 = vld [vmem:[#allocation2 + $0x228] sm:$0xff]
    %v180 = vld [vmem:[#allocation2 + $0x230] sm:$0xff]
    %v181 = vld [vmem:[#allocation2 + $0x238] sm:$0xff]
    %v182 = vld [vmem:[#allocation2 + $0x240] sm:$0xff]
    %v183 = vld [vmem:[#allocation2 + $0x248] sm:$0xff]
    %v184 = vld [vmem:[#allocation2 + $0x250] sm:$0xff]
    %v185 = vld [vmem:[#allocation2 + $0x258] sm:$0xff]
    %v186 = vld [vmem:[#allocation2 + $0x260] sm:$0xff]
    %v187 = vld [vmem:[#allocation2 + $0x268] sm:$0xff]
    %v188 = vld [vmem:[#allocation2 + $0x270] sm:$0xff]
    %v189 = vld [vmem:[#allocation2 + $0x278] sm:$0xff]
    %v190 = vld [vmem:[#allocation2 + $0x280] sm:$0xff]
    %v191 = vld [vmem:[#allocation2 + $0x288] sm:$0xff]
    %v192 = vld [vmem:[#allocation2 + $0x290] sm:$0xff]
    %v193 = vld [vmem:[#allocation2 + $0x298] sm:$0xff]
    %v194 = vld [vmem:[#allocation2 + $0x2a0] sm:$0xff]
    %v195 = vld [vmem:[#allocation2 + $0x2a8] sm:$0xff]
    %v196 = vld [vmem:[#allocation2 + $0x2b0] sm:$0xff]
    %v197 = vld [vmem:[#allocation2 + $0x2b8] sm:$0xff]
    %v198 = vld [vmem:[#allocation2 + $0x2c0] sm:$0xff]
    %v199 = vld [vmem:[#allocation2 + $0x2c8] sm:$0xff]
    %v200 = vld [vmem:[#allocation2 + $0x2d0] sm:$0xff]
    %v201 = vld [vmem:[#allocation2 + $0x2d8] sm:$0xff]
    %v202 = vld [vmem:[#allocation2 + $0x2e0] sm:$0xff]
    %v203 = vld [vmem:[#allocation2 + $0x2e8] sm:$0xff]
    %v204 = vld [vmem:[#allocation2 + $0x2f0] sm:$0xff]
    %v205 = vld [vmem:[#allocation2 + $0x2f8] sm:$0xff]
    %v206 = vld [vmem:[#allocation2 + $0x300] sm:$0xff]
    %v207 = vld [vmem:[#allocation2 + $0x308] sm:$0xff]
    %v208 = vld [vmem:[#allocation2 + $0x310] sm:$0xff]
    %v209 = vld [vmem:[#allocation2 + $0x318] sm:$0xff]
    %v210 = vld [vmem:[#allocation2 + $0x320] sm:$0xff]
    %v211 = vld [vmem:[#allocation2 + $0x328] sm:$0xff]
    %v212 = vld [vmem:[#allocation2 + $0x330] sm:$0xff]
    %v213 = vld [vmem:[#allocation2 + $0x338] sm:$0xff]
    %v214 = vld [vmem:[#allocation2 + $0x340] sm:$0xff]
    %v215 = vld [vmem:[#allocation2 + $0x348] sm:$0xff]
    %v216 = vld [vmem:[#allocation2 + $0x350] sm:$0xff]
    %v217 = vld [vmem:[#allocation2 + $0x358] sm:$0xff]
    %v218 = vld [vmem:[#allocation2 + $0x360] sm:$0xff]
    %v219 = vld [vmem:[#allocation2 + $0x368] sm:$0xff]
    %v220 = vld [vmem:[#allocation2 + $0x370] sm:$0xff]
    %v221 = vld [vmem:[#allocation2 + $0x378] sm:$0xff]
    %v222 = vld [vmem:[#allocation2 + $0x380] sm:$0xff]
    %v223 = vld [vmem:[#allocation2 + $0x388] sm:$0xff]
    %v224 = vld [vmem:[#allocation2 + $0x390] sm:$0xff]
    %v225 = vld [vmem:[#allocation2 + $0x398] sm:$0xff]
    %v226 = vld [vmem:[#allocation2 + $0x3a0] sm:$0xff]
    %v227 = vld [vmem:[#allocation2 + $0x3a8] sm:$0xff]
    %v228 = vld [vmem:[#allocation2 + $0x3b0] sm:$0xff]
    %v229 = vld [vmem:[#allocation2 + $0x3b8] sm:$0xff]
    %v230 = vld [vmem:[#allocation2 + $0x3c0] sm:$0xff]
    %v231 = vld [vmem:[#allocation2 + $0x3c8] sm:$0xff]
    %v232 = vld [vmem:[#allocation2 + $0x3d0] sm:$0xff]
    %v233 = vld [vmem:[#allocation2 + $0x3d8] sm:$0xff]
    %v234 = vld [vmem:[#allocation2 + $0x3e0] sm:$0xff]
    %v235 = vld [vmem:[#allocation2 + $0x3e8] sm:$0xff]
    %v236 = vld [vmem:[#allocation2 + $0x3f0] sm:$0xff]
    %v237 = vld [vmem:[#allocation2 + $0x3f8] sm:$0xff]
    %v238 = vld [vmem:[#allocation2 + $0x400] sm:$0xff]
    %v239 = vld [vmem:[#allocation2 + $0x408] sm:$0xff]
    %v240 = vld [vmem:[#allocation2 + $0x410] sm:$0xff]
    %v241 = vld [vmem:[#allocation2 + $0x418] sm:$0xff]
    %v242 = vld [vmem:[#allocation2 + $0x420] sm:$0xff]
    %v243 = vld [vmem:[#allocation2 + $0x428] sm:$0xff]
    %v244 = vld [vmem:[#allocation2 + $0x430] sm:$0xff]
    %v245 = vld [vmem:[#allocation2 + $0x438] sm:$0xff]
    %v246 = vld [vmem:[#allocation2 + $0x440] sm:$0xff]
    %v247 = vld [vmem:[#allocation2 + $0x448] sm:$0xff]
    %v248 = vld [vmem:[#allocation2 + $0x450] sm:$0xff]
    %v249 = vld [vmem:[#allocation2 + $0x458] sm:$0xff]
    %v250 = vld [vmem:[#allocation2 + $0x460] sm:$0xff]
    %v251 = vld [vmem:[#allocation2 + $0x468] sm:$0xff]
    %v252 = vld [vmem:[#allocation2 + $0x470] sm:$0xff]
    %v253 = vld [vmem:[#allocation2 + $0x478] sm:$0xff]
    %v254 = vld [vmem:[#allocation2 + $0x480] sm:$0xff]
    %v255 = vld [vmem:[#allocation2 + $0x488] sm:$0xff]
    %v256 = vld [vmem:[#allocation2 + $0x490] sm:$0xff]
    %v257 = vld [vmem:[#allocation2 + $0x498] sm:$0xff]
    %v258 = vld [vmem:[#allocation2 + $0x4a0] sm:$0xff]
    %v259 = vld [vmem:[#allocation2 + $0x4a8] sm:$0xff]
    %v260 = vld [vmem:[#allocation2 + $0x4b0] sm:$0xff]
    %v261 = vld [vmem:[#allocation2 + $0x4b8] sm:$0xff]
    %v262 = vld [vmem:[#allocation2 + $0x4c0] sm:$0xff]
    %v263 = vld [vmem:[#allocation2 + $0x4c8] sm:$0xff]
    %v264 = vld [vmem:[#allocation2 + $0x4d0] sm:$0xff]
    %v265 = vld [vmem:[#allocation2 + $0x4d8] sm:$0xff]
    %v266 = vld [vmem:[#allocation2 + $0x4e0] sm:$0xff]
    %v267 = vld [vmem:[#allocation2 + $0x4e8] sm:$0xff]
    %v268 = vld [vmem:[#allocation2 + $0x4f0] sm:$0xff]
    %v269 = vld [vmem:[#allocation2 + $0x4f8] sm:$0xff]
    %v270 = vld [vmem:[#allocation2 + $0x500] sm:$0xff]
    %v271 = vld [vmem:[#allocation2 + $0x508] sm:$0xff]
    %v272 = vld [vmem:[#allocation2 + $0x510] sm:$0xff]
    %v273 = vld [vmem:[#allocation2 + $0x518] sm:$0xff]
    %v274 = vld [vmem:[#allocation2 + $0x520] sm:$0xff]
    %v275 = vld [vmem:[#allocation2 + $0x528] sm:$0xff]
    %v276 = vld [vmem:[#allocation2 + $0x530] sm:$0xff]
    %v277 = vld [vmem:[#allocation2 + $0x538] sm:$0xff]
    %v278 = vld [vmem:[#allocation2 + $0x540] sm:$0xff]
    %v279 = vld [vmem:[#allocation2 + $0x548] sm:$0xff]
    %v280 = vld [vmem:[#allocation2 + $0x550] sm:$0xff]
    %v281 = vld [vmem:[#allocation2 + $0x558] sm:$0xff]
    %v282 = vld [vmem:[#allocation2 + $0x560] sm:$0xff]
    %v283 = vld [vmem:[#allocation2 + $0x568] sm:$0xff]
    %v284 = vld [vmem:[#allocation2 + $0x570] sm:$0xff]
    %v285 = vld [vmem:[#allocation2 + $0x578] sm:$0xff]
    %v286 = vld [vmem:[#allocation2 + $0x580] sm:$0xff]
    %v287 = vld [vmem:[#allocation2 + $0x588] sm:$0xff]
    %v288 = vld [vmem:[#allocation2 + $0x590] sm:$0xff]
    %v289 = vld [vmem:[#allocation2 + $0x598] sm:$0xff]
    %v290 = vld [vmem:[#allocation2 + $0x5a0] sm:$0xff]
    %v291 = vld [vmem:[#allocation2 + $0x5a8] sm:$0xff]
    %v292 = vld [vmem:[#allocation2 + $0x5b0] sm:$0xff]
    %v293 = vld [vmem:[#allocation2 + $0x5b8] sm:$0xff]
    %v294 = vld [vmem:[#allocation2 + $0x5c0] sm:$0xff]
    %v295 = vld [vmem:[#allocation2 + $0x5c8] sm:$0xff]
    %v296 = vld [vmem:[#allocation2 + $0x5d0] sm:$0xff]
    %v297 = vld [vmem:[#allocation2 + $0x5d8] sm:$0xff]
    %v298 = vld [vmem:[#allocation2 + $0x5e0] sm:$0xff]
    %v299 = vld [vmem:[#allocation2 + $0x5e8] sm:$0xff]
    %v300 = vld [vmem:[#allocation2 + $0x5f0] sm:$0xff]
    %v301 = vld [vmem:[#allocation2 + $0x5f8] sm:$0xff]
    %v302 = vld [vmem:[#allocation2 + $0x600] sm:$0xff]
    %v303 = vld [vmem:[#allocation2 + $0x608] sm:$0xff]
    %v304 = vld [vmem:[#allocation2 + $0x610] sm:$0xff]
    %v305 = vld [vmem:[#allocation2 + $0x618] sm:$0xff]
    %v306 = vld [vmem:[%s2] sm:$0xf]
    %v308 = vlaneseq
    %v309 = vshrl.u32 %v308, 7
    %v310 = vsub.s32 0, %v309
    %v311 = vrot.slane %v306, %v310
    %v312 = vlaneseq
    %v313 = vshrl.u32 %v312, 7
    %v314 = vsub.s32 1, %v313
    %v315 = vrot.slane %v306, %v314
    %v316 = vlaneseq
    %v317 = vshrl.u32 %v316, 7
    %v318 = vsub.s32 2, %v317
    %v319 = vrot.slane %v306, %v318
    %v320 = vlaneseq
    %v321 = vshrl.u32 %v320, 7
    %v322 = vsub.s32 3, %v321
    %v323 = vrot.slane %v306, %v322
    %v524 = vunpack.c.l.b16 %v110
    %v525 = vunpack.c.h.b16 %v110
    %v526 = vunpack.c.l.b16 %v111
    %v527 = vunpack.c.h.b16 %v111
    %v528 = vunpack.c.l.b16 %v112
    %v529 = vunpack.c.h.b16 %v112
    %v530 = vunpack.c.l.b16 %v113
    %v531 = vunpack.c.h.b16 %v113
    %v532 = vunpack.c.l.b16 %v114
    %v533 = vunpack.c.h.b16 %v114
    %v534 = vunpack.c.l.b16 %v115
    %v535 = vunpack.c.h.b16 %v115
    %v536 = vunpack.c.l.b16 %v116
    %v537 = vunpack.c.h.b16 %v116
    %v538 = vunpack.c.l.b16 %v117
    %v539 = vunpack.c.h.b16 %v117
    %v540 = vunpack.c.l.b16 %v118
    %v541 = vunpack.c.h.b16 %v118
    %v542 = vunpack.c.l.b16 %v119
    %v543 = vunpack.c.h.b16 %v119
    %v544 = vunpack.c.l.b16 %v120
    %v545 = vunpack.c.h.b16 %v120
    %v546 = vunpack.c.l.b16 %v121
    %v547 = vunpack.c.h.b16 %v121
    %v548 = vunpack.c.l.b16 %v122
    %v549 = vunpack.c.h.b16 %v122
    %v550 = vunpack.c.l.b16 %v123
    %v551 = vunpack.c.h.b16 %v123
    %v552 = vunpack.c.l.b16 %v124
    %v553 = vunpack.c.h.b16 %v124
    %v554 = vunpack.c.l.b16 %v125
    %v555 = vunpack.c.h.b16 %v125
    %v556 = vunpack.c.l.b16 %v126
    %v557 = vunpack.c.h.b16 %v126
    %v558 = vunpack.c.l.b16 %v127
    %v559 = vunpack.c.h.b16 %v127
    %v560 = vunpack.c.l.b16 %v128
    %v561 = vunpack.c.h.b16 %v128
    %v562 = vunpack.c.l.b16 %v129
    %v563 = vunpack.c.h.b16 %v129
    %v564 = vunpack.c.l.b16 %v130
    %v565 = vunpack.c.h.b16 %v130
    %v566 = vunpack.c.l.b16 %v131
    %v567 = vunpack.c.h.b16 %v131
    %v568 = vunpack.c.l.b16 %v132
    %v569 = vunpack.c.h.b16 %v132
    %v570 = vunpack.c.l.b16 %v133
    %v571 = vunpack.c.h.b16 %v133
    %v572 = vunpack.c.l.b16 %v134
    %v573 = vunpack.c.h.b16 %v134
    %v574 = vunpack.c.l.b16 %v135
    %v575 = vunpack.c.h.b16 %v135
    %v576 = vunpack.c.l.b16 %v136
    %v577 = vunpack.c.h.b16 %v136
    %v578 = vunpack.c.l.b16 %v137
    %v579 = vunpack.c.h.b16 %v137
    %v580 = vunpack.c.l.b16 %v138
    %v581 = vunpack.c.h.b16 %v138
    %v582 = vunpack.c.l.b16 %v139
    %v583 = vunpack.c.h.b16 %v139
    %v584 = vunpack.c.l.b16 %v140
    %v585 = vunpack.c.h.b16 %v140
    %v586 = vunpack.c.l.b16 %v141
    %v587 = vunpack.c.h.b16 %v141
    %v588 = vunpack.c.l.b16 %v142
    %v589 = vunpack.c.h.b16 %v142
    %v590 = vunpack.c.l.b16 %v143
    %v591 = vunpack.c.h.b16 %v143
    %v592 = vunpack.c.l.b16 %v144
    %v593 = vunpack.c.h.b16 %v144
    %v594 = vunpack.c.l.b16 %v145
    %v595 = vunpack.c.h.b16 %v145
    %v596 = vunpack.c.l.b16 %v146
    %v597 = vunpack.c.h.b16 %v146
    %v598 = vunpack.c.l.b16 %v147
    %v599 = vunpack.c.h.b16 %v147
    %v600 = vunpack.c.l.b16 %v148
    %v601 = vunpack.c.h.b16 %v148
    %v602 = vunpack.c.l.b16 %v149
    %v603 = vunpack.c.h.b16 %v149
    %v604 = vunpack.c.l.b16 %v150
    %v605 = vunpack.c.h.b16 %v150
    %v606 = vunpack.c.l.b16 %v151
    %v607 = vunpack.c.h.b16 %v151
    %v608 = vunpack.c.l.b16 %v152
    %v609 = vunpack.c.h.b16 %v152
    %v610 = vunpack.c.l.b16 %v153
    %v611 = vunpack.c.h.b16 %v153
    %v612 = vunpack.c.l.b16 %v154
    %v613 = vunpack.c.h.b16 %v154
    %v614 = vunpack.c.l.b16 %v155
    %v615 = vunpack.c.h.b16 %v155
    %v616 = vunpack.c.l.b16 %v156
    %v617 = vunpack.c.h.b16 %v156
    %v618 = vunpack.c.l.b16 %v157
    %v619 = vunpack.c.h.b16 %v157
    %v620 = vunpack.c.l.b16 %v158
    %v621 = vunpack.c.h.b16 %v158
    %v622 = vunpack.c.l.b16 %v159
    %v623 = vunpack.c.h.b16 %v159
    %v624 = vunpack.c.l.b16 %v160
    %v625 = vunpack.c.h.b16 %v160
    %v626 = vunpack.c.l.b16 %v161
    %v627 = vunpack.c.h.b16 %v161
    %v628 = vunpack.c.l.b16 %v162
    %v629 = vunpack.c.h.b16 %v162
    %v630 = vunpack.c.l.b16 %v163
    %v631 = vunpack.c.h.b16 %v163
    %v632 = vunpack.c.l.b16 %v164
    %v633 = vunpack.c.h.b16 %v164
    %v634 = vunpack.c.l.b16 %v165
    %v635 = vunpack.c.h.b16 %v165
    %v636 = vunpack.c.l.b16 %v166
    %v637 = vunpack.c.h.b16 %v166
    %v638 = vunpack.c.l.b16 %v167
    %v639 = vunpack.c.h.b16 %v167
    %v640 = vunpack.c.l.b16 %v168
    %v641 = vunpack.c.h.b16 %v168
    %v642 = vunpack.c.l.b16 %v169
    %v643 = vunpack.c.h.b16 %v169
    %v644 = vunpack.c.l.b16 %v170
    %v645 = vunpack.c.h.b16 %v170
    %v646 = vunpack.c.l.b16 %v171
    %v647 = vunpack.c.h.b16 %v171
    %v648 = vunpack.c.l.b16 %v172
    %v649 = vunpack.c.h.b16 %v172
    %v650 = vunpack.c.l.b16 %v173
    %v651 = vunpack.c.h.b16 %v173
    %v652 = vunpack.c.l.b16 %v174
    %v653 = vunpack.c.h.b16 %v174
    %v654 = vunpack.c.l.b16 %v175
    %v655 = vunpack.c.h.b16 %v175
    %v656 = vunpack.c.l.b16 %v176
    %v657 = vunpack.c.h.b16 %v176
    %v658 = vunpack.c.l.b16 %v177
    %v659 = vunpack.c.h.b16 %v177
    %v660 = vunpack.c.l.b16 %v178
    %v661 = vunpack.c.h.b16 %v178
    %v662 = vunpack.c.l.b16 %v179
    %v663 = vunpack.c.h.b16 %v179
    %v664 = vunpack.c.l.b16 %v180
    %v665 = vunpack.c.h.b16 %v180
    %v666 = vunpack.c.l.b16 %v181
    %v667 = vunpack.c.h.b16 %v181
    %v668 = vunpack.c.l.b16 %v182
    %v669 = vunpack.c.h.b16 %v182
    %v670 = vunpack.c.l.b16 %v183
    %v671 = vunpack.c.h.b16 %v183
    %v672 = vunpack.c.l.b16 %v184
    %v673 = vunpack.c.h.b16 %v184
    %v674 = vunpack.c.l.b16 %v185
    %v675 = vunpack.c.h.b16 %v185
    %v676 = vunpack.c.l.b16 %v186
    %v677 = vunpack.c.h.b16 %v186
    %v678 = vunpack.c.l.b16 %v187
    %v679 = vunpack.c.h.b16 %v187
    %v680 = vunpack.c.l.b16 %v188
    %v681 = vunpack.c.h.b16 %v188
    %v682 = vunpack.c.l.b16 %v189
    %v683 = vunpack.c.h.b16 %v189
    %v684 = vunpack.c.l.b16 %v190
    %v685 = vunpack.c.h.b16 %v190
    %v686 = vunpack.c.l.b16 %v191
    %v687 = vunpack.c.h.b16 %v191
    %v688 = vunpack.c.l.b16 %v192
    %v689 = vunpack.c.h.b16 %v192
    %v690 = vunpack.c.l.b16 %v193
    %v691 = vunpack.c.h.b16 %v193
    %v692 = vunpack.c.l.b16 %v194
    %v693 = vunpack.c.h.b16 %v194
    %v694 = vunpack.c.l.b16 %v195
    %v695 = vunpack.c.h.b16 %v195
    %v696 = vunpack.c.l.b16 %v196
    %v697 = vunpack.c.h.b16 %v196
    %v698 = vunpack.c.l.b16 %v197
    %v699 = vunpack.c.h.b16 %v197
    %v700 = vunpack.c.l.b16 %v198
    %v701 = vunpack.c.h.b16 %v198
    %v702 = vunpack.c.l.b16 %v199
    %v703 = vunpack.c.h.b16 %v199
    %v704 = vunpack.c.l.b16 %v200
    %v705 = vunpack.c.h.b16 %v200
    %v706 = vunpack.c.l.b16 %v201
    %v707 = vunpack.c.h.b16 %v201
    %v708 = vunpack.c.l.b16 %v202
    %v709 = vunpack.c.h.b16 %v202
    %v710 = vunpack.c.l.b16 %v203
    %v711 = vunpack.c.h.b16 %v203
    %v712 = vunpack.c.l.b16 %v204
    %v713 = vunpack.c.h.b16 %v204
    %v714 = vunpack.c.l.b16 %v205
    %v715 = vunpack.c.h.b16 %v205
    %v716 = vunpack.c.l.b16 %v206
    %v717 = vunpack.c.h.b16 %v206
    %v718 = vunpack.c.l.b16 %v207
    %v719 = vunpack.c.h.b16 %v207
    %v720 = vunpack.c.l.b16 %v208
    %v721 = vunpack.c.h.b16 %v208
    %v722 = vunpack.c.l.b16 %v209
    %v723 = vunpack.c.h.b16 %v209
    %v724 = vunpack.c.l.b16 %v210
    %v725 = vunpack.c.h.b16 %v210
    %v726 = vunpack.c.l.b16 %v211
    %v727 = vunpack.c.h.b16 %v211
    %v728 = vunpack.c.l.b16 %v212
    %v729 = vunpack.c.h.b16 %v212
    %v730 = vunpack.c.l.b16 %v213
    %v731 = vunpack.c.h.b16 %v213
    %v732 = vunpack.c.l.b16 %v214
    %v733 = vunpack.c.h.b16 %v214
    %v734 = vunpack.c.l.b16 %v215
    %v735 = vunpack.c.h.b16 %v215
    %v736 = vunpack.c.l.b16 %v216
    %v737 = vunpack.c.h.b16 %v216
    %v738 = vunpack.c.l.b16 %v217
    %v739 = vunpack.c.h.b16 %v217
    %v740 = vunpack.c.l.b16 %v218
    %v741 = vunpack.c.h.b16 %v218
    %v742 = vunpack.c.l.b16 %v219
    %v743 = vunpack.c.h.b16 %v219
    %v744 = vunpack.c.l.b16 %v220
    %v745 = vunpack.c.h.b16 %v220
    %v746 = vunpack.c.l.b16 %v221
    %v747 = vunpack.c.h.b16 %v221
    %v748 = vunpack.c.l.b16 %v222
    %v749 = vunpack.c.h.b16 %v222
    %v750 = vunpack.c.l.b16 %v223
    %v751 = vunpack.c.h.b16 %v223
    %v752 = vunpack.c.l.b16 %v224
    %v753 = vunpack.c.h.b16 %v224
    %v754 = vunpack.c.l.b16 %v225
    %v755 = vunpack.c.h.b16 %v225
    %v756 = vunpack.c.l.b16 %v226
    %v757 = vunpack.c.h.b16 %v226
    %v758 = vunpack.c.l.b16 %v227
    %v759 = vunpack.c.h.b16 %v227
    %v760 = vunpack.c.l.b16 %v228
    %v761 = vunpack.c.h.b16 %v228
    %v762 = vunpack.c.l.b16 %v229
    %v763 = vunpack.c.h.b16 %v229
    %v764 = vunpack.c.l.b16 %v230
    %v765 = vunpack.c.h.b16 %v230
    %v766 = vunpack.c.l.b16 %v231
    %v767 = vunpack.c.h.b16 %v231
    %v768 = vunpack.c.l.b16 %v232
    %v769 = vunpack.c.h.b16 %v232
    %v770 = vunpack.c.l.b16 %v233
    %v771 = vunpack.c.h.b16 %v233
    %v772 = vunpack.c.l.b16 %v234
    %v773 = vunpack.c.h.b16 %v234
    %v774 = vunpack.c.l.b16 %v235
    %v775 = vunpack.c.h.b16 %v235
    %v776 = vunpack.c.l.b16 %v236
    %v777 = vunpack.c.h.b16 %v236
    %v778 = vunpack.c.l.b16 %v237
    %v779 = vunpack.c.h.b16 %v237
    %v780 = vunpack.c.l.b16 %v238
    %v781 = vunpack.c.h.b16 %v238
    %v782 = vunpack.c.l.b16 %v239
    %v783 = vunpack.c.h.b16 %v239
    %v784 = vunpack.c.l.b16 %v240
    %v785 = vunpack.c.h.b16 %v240
    %v786 = vunpack.c.l.b16 %v241
    %v787 = vunpack.c.h.b16 %v241
    %v788 = vunpack.c.l.b16 %v242
    %v789 = vunpack.c.h.b16 %v242
    %v790 = vunpack.c.l.b16 %v243
    %v791 = vunpack.c.h.b16 %v243
    %v792 = vunpack.c.l.b16 %v244
    %v793 = vunpack.c.h.b16 %v244
    %v794 = vunpack.c.l.b16 %v245
    %v795 = vunpack.c.h.b16 %v245
    %v796 = vunpack.c.l.b16 %v246
    %v797 = vunpack.c.h.b16 %v246
    %v798 = vunpack.c.l.b16 %v247
    %v799 = vunpack.c.h.b16 %v247
    %v800 = vunpack.c.l.b16 %v248
    %v801 = vunpack.c.h.b16 %v248
    %v802 = vunpack.c.l.b16 %v249
    %v803 = vunpack.c.h.b16 %v249
    %v804 = vunpack.c.l.b16 %v250
    %v805 = vunpack.c.h.b16 %v250
    %v806 = vunpack.c.l.b16 %v251
    %v807 = vunpack.c.h.b16 %v251
    %v808 = vunpack.c.l.b16 %v252
    %v809 = vunpack.c.h.b16 %v252
    %v810 = vunpack.c.l.b16 %v253
    %v811 = vunpack.c.h.b16 %v253
    %v812 = vunpack.c.l.b16 %v254
    %v813 = vunpack.c.h.b16 %v254
    %v814 = vunpack.c.l.b16 %v255
    %v815 = vunpack.c.h.b16 %v255
    %v816 = vunpack.c.l.b16 %v256
    %v817 = vunpack.c.h.b16 %v256
    %v818 = vunpack.c.l.b16 %v257
    %v819 = vunpack.c.h.b16 %v257
    %v820 = vunpack.c.l.b16 %v258
    %v821 = vunpack.c.h.b16 %v258
    %v822 = vunpack.c.l.b16 %v259
    %v823 = vunpack.c.h.b16 %v259
    %v824 = vunpack.c.l.b16 %v260
    %v825 = vunpack.c.h.b16 %v260
    %v826 = vunpack.c.l.b16 %v261
    %v827 = vunpack.c.h.b16 %v261
    %v828 = vunpack.c.l.b16 %v262
    %v829 = vunpack.c.h.b16 %v262
    %v830 = vunpack.c.l.b16 %v263
    %v831 = vunpack.c.h.b16 %v263
    %v832 = vunpack.c.l.b16 %v264
    %v833 = vunpack.c.h.b16 %v264
    %v834 = vunpack.c.l.b16 %v265
    %v835 = vunpack.c.h.b16 %v265
    %v836 = vunpack.c.l.b16 %v266
    %v837 = vunpack.c.h.b16 %v266
    %v838 = vunpack.c.l.b16 %v267
    %v839 = vunpack.c.h.b16 %v267
    %v840 = vunpack.c.l.b16 %v268
    %v841 = vunpack.c.h.b16 %v268
    %v842 = vunpack.c.l.b16 %v269
    %v843 = vunpack.c.h.b16 %v269
    %v844 = vunpack.c.l.b16 %v270
    %v845 = vunpack.c.h.b16 %v270
    %v846 = vunpack.c.l.b16 %v271
    %v847 = vunpack.c.h.b16 %v271
    %v848 = vunpack.c.l.b16 %v272
    %v849 = vunpack.c.h.b16 %v272
    %v850 = vunpack.c.l.b16 %v273
    %v851 = vunpack.c.h.b16 %v273
    %v852 = vunpack.c.l.b16 %v274
    %v853 = vunpack.c.h.b16 %v274
    %v854 = vunpack.c.l.b16 %v275
    %v855 = vunpack.c.h.b16 %v275
    %v856 = vunpack.c.l.b16 %v276
    %v857 = vunpack.c.h.b16 %v276
    %v858 = vunpack.c.l.b16 %v277
    %v859 = vunpack.c.h.b16 %v277
    %v860 = vunpack.c.l.b16 %v278
    %v861 = vunpack.c.h.b16 %v278
    %v862 = vunpack.c.l.b16 %v279
    %v863 = vunpack.c.h.b16 %v279
    %v864 = vunpack.c.l.b16 %v280
    %v865 = vunpack.c.h.b16 %v280
    %v866 = vunpack.c.l.b16 %v281
    %v867 = vunpack.c.h.b16 %v281
    %v868 = vunpack.c.l.b16 %v282
    %v869 = vunpack.c.h.b16 %v282
    %v870 = vunpack.c.l.b16 %v283
    %v871 = vunpack.c.h.b16 %v283
    %v872 = vunpack.c.l.b16 %v284
    %v873 = vunpack.c.h.b16 %v284
    %v874 = vunpack.c.l.b16 %v285
    %v875 = vunpack.c.h.b16 %v285
    %v876 = vunpack.c.l.b16 %v286
    %v877 = vunpack.c.h.b16 %v286
    %v878 = vunpack.c.l.b16 %v287
    %v879 = vunpack.c.h.b16 %v287
    %v880 = vunpack.c.l.b16 %v288
    %v881 = vunpack.c.h.b16 %v288
    %v882 = vunpack.c.l.b16 %v289
    %v883 = vunpack.c.h.b16 %v289
    %v884 = vunpack.c.l.b16 %v290
    %v885 = vunpack.c.h.b16 %v290
    %v886 = vunpack.c.l.b16 %v291
    %v887 = vunpack.c.h.b16 %v291
    %v888 = vunpack.c.l.b16 %v292
    %v889 = vunpack.c.h.b16 %v292
    %v890 = vunpack.c.l.b16 %v293
    %v891 = vunpack.c.h.b16 %v293
    %v892 = vunpack.c.l.b16 %v294
    %v893 = vunpack.c.h.b16 %v294
    %v894 = vunpack.c.l.b16 %v295
    %v895 = vunpack.c.h.b16 %v295
    %v896 = vunpack.c.l.b16 %v296
    %v897 = vunpack.c.h.b16 %v296
    %v898 = vunpack.c.l.b16 %v297
    %v899 = vunpack.c.h.b16 %v297
    %v900 = vunpack.c.l.b16 %v298
    %v901 = vunpack.c.h.b16 %v298
    %v902 = vunpack.c.l.b16 %v299
    %v903 = vunpack.c.h.b16 %v299
    %v904 = vunpack.c.l.b16 %v300
    %v905 = vunpack.c.h.b16 %v300
    %v906 = vunpack.c.l.b16 %v301
    %v907 = vunpack.c.h.b16 %v301
    %v908 = vunpack.c.l.b16 %v302
    %v909 = vunpack.c.h.b16 %v302
    %v910 = vunpack.c.l.b16 %v303
    %v911 = vunpack.c.h.b16 %v303
    %v912 = vunpack.c.l.b16 %v304
    %v913 = vunpack.c.h.b16 %v304
    %v914 = vunpack.c.l.b16 %v305
    %v915 = vunpack.c.h.b16 %v305
    %v916 = vpack.c.b16 %v528, %v524
    %v917 = vpack.c.b16 %v529, %v525
    %v918 = vpack.c.b16 %v530, %v526
    %v919 = vpack.c.b16 %v531, %v527
    %v920 = vpack.c.b16 %v536, %v532
    %v921 = vpack.c.b16 %v537, %v533
    %v922 = vpack.c.b16 %v538, %v534
    %v923 = vpack.c.b16 %v539, %v535
    %v924 = vpack.c.b16 %v544, %v540
    %v925 = vpack.c.b16 %v545, %v541
    %v926 = vpack.c.b16 %v546, %v542
    %v927 = vpack.c.b16 %v547, %v543
    %v928 = vpack.c.b16 %v552, %v548
    %v929 = vpack.c.b16 %v553, %v549
    %v930 = vpack.c.b16 %v554, %v550
    %v931 = vpack.c.b16 %v555, %v551
    %v932 = vpack.c.b16 %v560, %v556
    %v933 = vpack.c.b16 %v561, %v557
    %v934 = vpack.c.b16 %v562, %v558
    %v935 = vpack.c.b16 %v563, %v559
    %v936 = vpack.c.b16 %v568, %v564
    %v937 = vpack.c.b16 %v569, %v565
    %v938 = vpack.c.b16 %v570, %v566
    %v939 = vpack.c.b16 %v571, %v567
    %v940 = vpack.c.b16 %v576, %v572
    %v941 = vpack.c.b16 %v577, %v573
    %v942 = vpack.c.b16 %v578, %v574
    %v943 = vpack.c.b16 %v579, %v575
    %v944 = vpack.c.b16 %v584, %v580
    %v945 = vpack.c.b16 %v585, %v581
    %v946 = vpack.c.b16 %v586, %v582
    %v947 = vpack.c.b16 %v587, %v583
    %v948 = vpack.c.b16 %v592, %v588
    %v949 = vpack.c.b16 %v593, %v589
    %v950 = vpack.c.b16 %v594, %v590
    %v951 = vpack.c.b16 %v595, %v591
    %v952 = vpack.c.b16 %v600, %v596
    %v953 = vpack.c.b16 %v601, %v597
    %v954 = vpack.c.b16 %v602, %v598
    %v955 = vpack.c.b16 %v603, %v599
    %v956 = vpack.c.b16 %v608, %v604
    %v957 = vpack.c.b16 %v609, %v605
    %v958 = vpack.c.b16 %v610, %v606
    %v959 = vpack.c.b16 %v611, %v607
    %v960 = vpack.c.b16 %v616, %v612
    %v961 = vpack.c.b16 %v617, %v613
    %v962 = vpack.c.b16 %v618, %v614
    %v963 = vpack.c.b16 %v619, %v615
    %v964 = vpack.c.b16 %v624, %v620
    %v965 = vpack.c.b16 %v625, %v621
    %v966 = vpack.c.b16 %v626, %v622
    %v967 = vpack.c.b16 %v627, %v623
    %v968 = vpack.c.b16 %v632, %v628
    %v969 = vpack.c.b16 %v633, %v629
    %v970 = vpack.c.b16 %v634, %v630
    %v971 = vpack.c.b16 %v635, %v631
    %v972 = vpack.c.b16 %v640, %v636
    %v973 = vpack.c.b16 %v641, %v637
    %v974 = vpack.c.b16 %v642, %v638
    %v975 = vpack.c.b16 %v643, %v639
    %v976 = vpack.c.b16 %v648, %v644
    %v977 = vpack.c.b16 %v649, %v645
    %v978 = vpack.c.b16 %v650, %v646
    %v979 = vpack.c.b16 %v651, %v647
    %v980 = vpack.c.b16 %v656, %v652
    %v981 = vpack.c.b16 %v657, %v653
    %v982 = vpack.c.b16 %v658, %v654
    %v983 = vpack.c.b16 %v659, %v655
    %v984 = vpack.c.b16 %v664, %v660
    %v985 = vpack.c.b16 %v665, %v661
    %v986 = vpack.c.b16 %v666, %v662
    %v987 = vpack.c.b16 %v667, %v663
    %v988 = vpack.c.b16 %v672, %v668
    %v989 = vpack.c.b16 %v673, %v669
    %v990 = vpack.c.b16 %v674, %v670
    %v991 = vpack.c.b16 %v675, %v671
    %v992 = vpack.c.b16 %v680, %v676
    %v993 = vpack.c.b16 %v681, %v677
    %v994 = vpack.c.b16 %v682, %v678
    %v995 = vpack.c.b16 %v683, %v679
    %v996 = vpack.c.b16 %v688, %v684
    %v997 = vpack.c.b16 %v689, %v685
    %v998 = vpack.c.b16 %v690, %v686
    %v999 = vpack.c.b16 %v691, %v687
    %v1000 = vpack.c.b16 %v696, %v692
    %v1001 = vpack.c.b16 %v697, %v693
    %v1002 = vpack.c.b16 %v698, %v694
    %v1003 = vpack.c.b16 %v699, %v695
    %v1004 = vpack.c.b16 %v704, %v700
    %v1005 = vpack.c.b16 %v705, %v701
    %v1006 = vpack.c.b16 %v706, %v702
    %v1007 = vpack.c.b16 %v707, %v703
    %v1008 = vpack.c.b16 %v712, %v708
    %v1009 = vpack.c.b16 %v713, %v709
    %v1010 = vpack.c.b16 %v714, %v710
    %v1011 = vpack.c.b16 %v715, %v711
    %v1012 = vpack.c.b16 %v720, %v716
    %v1013 = vpack.c.b16 %v721, %v717
    %v1014 = vpack.c.b16 %v722, %v718
    %v1015 = vpack.c.b16 %v723, %v719
    %v1016 = vpack.c.b16 %v728, %v724
    %v1017 = vpack.c.b16 %v729, %v725
    %v1018 = vpack.c.b16 %v730, %v726
    %v1019 = vpack.c.b16 %v731, %v727
    %v1020 = vpack.c.b16 %v736, %v732
    %v1021 = vpack.c.b16 %v737, %v733
    %v1022 = vpack.c.b16 %v738, %v734
    %v1023 = vpack.c.b16 %v739, %v735
    %v1024 = vpack.c.b16 %v744, %v740
    %v1025 = vpack.c.b16 %v745, %v741
    %v1026 = vpack.c.b16 %v746, %v742
    %v1027 = vpack.c.b16 %v747, %v743
    %v1028 = vpack.c.b16 %v752, %v748
    %v1029 = vpack.c.b16 %v753, %v749
    %v1030 = vpack.c.b16 %v754, %v750
    %v1031 = vpack.c.b16 %v755, %v751
    %v1032 = vpack.c.b16 %v760, %v756
    %v1033 = vpack.c.b16 %v761, %v757
    %v1034 = vpack.c.b16 %v762, %v758
    %v1035 = vpack.c.b16 %v763, %v759
    %v1036 = vpack.c.b16 %v768, %v764
    %v1037 = vpack.c.b16 %v769, %v765
    %v1038 = vpack.c.b16 %v770, %v766
    %v1039 = vpack.c.b16 %v771, %v767
    %v1040 = vpack.c.b16 %v776, %v772
    %v1041 = vpack.c.b16 %v777, %v773
    %v1042 = vpack.c.b16 %v778, %v774
    %v1043 = vpack.c.b16 %v779, %v775
    %v1044 = vpack.c.b16 %v784, %v780
    %v1045 = vpack.c.b16 %v785, %v781
    %v1046 = vpack.c.b16 %v786, %v782
    %v1047 = vpack.c.b16 %v787, %v783
    %v1048 = vpack.c.b16 %v792, %v788
    %v1049 = vpack.c.b16 %v793, %v789
    %v1050 = vpack.c.b16 %v794, %v790
    %v1051 = vpack.c.b16 %v795, %v791
    %v1052 = vpack.c.b16 %v800, %v796
    %v1053 = vpack.c.b16 %v801, %v797
    %v1054 = vpack.c.b16 %v802, %v798
    %v1055 = vpack.c.b16 %v803, %v799
    %v1056 = vpack.c.b16 %v808, %v804
    %v1057 = vpack.c.b16 %v809, %v805
    %v1058 = vpack.c.b16 %v810, %v806
    %v1059 = vpack.c.b16 %v811, %v807
    %v1060 = vpack.c.b16 %v816, %v812
    %v1061 = vpack.c.b16 %v817, %v813
    %v1062 = vpack.c.b16 %v818, %v814
    %v1063 = vpack.c.b16 %v819, %v815
    %v1064 = vpack.c.b16 %v824, %v820
    %v1065 = vpack.c.b16 %v825, %v821
    %v1066 = vpack.c.b16 %v826, %v822
    %v1067 = vpack.c.b16 %v827, %v823
    %v1068 = vpack.c.b16 %v832, %v828
    %v1069 = vpack.c.b16 %v833, %v829
    %v1070 = vpack.c.b16 %v834, %v830
    %v1071 = vpack.c.b16 %v835, %v831
    %v1072 = vpack.c.b16 %v840, %v836
    %v1073 = vpack.c.b16 %v841, %v837
    %v1074 = vpack.c.b16 %v842, %v838
    %v1075 = vpack.c.b16 %v843, %v839
    %v1076 = vpack.c.b16 %v848, %v844
    %v1077 = vpack.c.b16 %v849, %v845
    %v1078 = vpack.c.b16 %v850, %v846
    %v1079 = vpack.c.b16 %v851, %v847
    %v1080 = vpack.c.b16 %v856, %v852
    %v1081 = vpack.c.b16 %v857, %v853
    %v1082 = vpack.c.b16 %v858, %v854
    %v1083 = vpack.c.b16 %v859, %v855
    %v1084 = vpack.c.b16 %v864, %v860
    %v1085 = vpack.c.b16 %v865, %v861
    %v1086 = vpack.c.b16 %v866, %v862
    %v1087 = vpack.c.b16 %v867, %v863
    %v1088 = vpack.c.b16 %v872, %v868
    %v1089 = vpack.c.b16 %v873, %v869
    %v1090 = vpack.c.b16 %v874, %v870
    %v1091 = vpack.c.b16 %v875, %v871
    %v1092 = vpack.c.b16 %v880, %v876
    %v1093 = vpack.c.b16 %v881, %v877
    %v1094 = vpack.c.b16 %v882, %v878
    %v1095 = vpack.c.b16 %v883, %v879
    %v1096 = vpack.c.b16 %v888, %v884
    %v1097 = vpack.c.b16 %v889, %v885
    %v1098 = vpack.c.b16 %v890, %v886
    %v1099 = vpack.c.b16 %v891, %v887
    %v1100 = vpack.c.b16 %v896, %v892
    %v1101 = vpack.c.b16 %v897, %v893
    %v1102 = vpack.c.b16 %v898, %v894
    %v1103 = vpack.c.b16 %v899, %v895
    %v1104 = vpack.c.b16 %v904, %v900
    %v1105 = vpack.c.b16 %v905, %v901
    %v1106 = vpack.c.b16 %v906, %v902
    %v1107 = vpack.c.b16 %v907, %v903
    %v1108 = vpack.c.b16 %v912, %v908
    %v1109 = vpack.c.b16 %v913, %v909
    %v1110 = vpack.c.b16 %v914, %v910
    %v1111 = vpack.c.b16 %v915, %v911
    %vm1308 = vcmask 130048
    %v1310 = vsel %vm1308, %v95, 0
    %v1313 = vsel %vm1308, %v102, 0
    %v1316 = vsel %vm1308, %v109, 0
    %1318 = vmatprep.subr.bf16.mxu0 %v917
    %1319 = vmatpush1.bf16.msra.mxu0 %v916
    %1320 = vmatprep.subr.bf16.mxu0 %v921
    %1321 = vmatpush1.bf16.msra.mxu0 %v920
    %1322 = vmatprep.subr.bf16.mxu0 %v925
    %1323 = vmatpush1.bf16.msra.mxu0 %v924
    %1324 = vmatprep.subr.bf16.mxu0 %v929
    %1325 = vmatpush1.bf16.msra.mxu0 %v928
    %1326 = vmatprep.subr.bf16.mxu0 %v933
    %1327 = vmatpush1.bf16.msra.mxu0 %v932
    %1328 = vmatprep.subr.bf16.mxu0 %v937
    %1329 = vmatpush1.bf16.msra.mxu0 %v936
    %1330 = vmatprep.subr.bf16.mxu0 %v941
    %1331 = vmatpush1.bf16.msra.mxu0 %v940
    %1332 = vmatprep.subr.bf16.mxu0 %v945
    %1333 = vmatpush1.bf16.msra.mxu0 %v944
    %1334 = vmatprep.subr.bf16.mxu0 %v949
    %1335 = vmatpush1.bf16.msra.mxu0 %v948
    %1336 = vmatprep.subr.bf16.mxu0 %v953
    %1337 = vmatpush1.bf16.msra.mxu0 %v952
    %1338 = vmatprep.subr.bf16.mxu0 %v957
    %1339 = vmatpush1.bf16.msra.mxu0 %v956
    %1340 = vmatprep.subr.bf16.mxu0 %v961
    %1341 = vmatpush1.bf16.msra.mxu0 %v960
    %1342 = vmatprep.subr.bf16.mxu0 %v965
    %1343 = vmatpush1.bf16.msra.mxu0 %v964
    %1344 = vmatprep.subr.bf16.mxu0 %v969
    %1345 = vmatpush1.bf16.msra.mxu0 %v968
    %1346 = vmatprep.subr.bf16.mxu0 %v973
    %1347 = vmatpush1.bf16.msra.mxu0 %v972
    %1348 = vmatprep.subr.bf16.mxu0 %v977
    %1349 = vmatpush1.bf16.msra.mxu0 %v976
    %1350 = vmatprep.mubr.bf16.mxu0 %v90
    %1351 = vmatmul.mubr.bf16.gmra.mrb[0].mxu0 %v89
    %v1352 = vpop.f32.mrb[0].mxu0
    %v1353 = vadd.f32 %v311, %v1352
    %v1354 = vpop.f32.mrb[0].mxu0
    %v1355 = vadd.f32 %v315, %v1354
    %v1356 = vpop.f32.mrb[0].mxu0
    %v1357 = vadd.f32 %v311, %v1356
    %v1358 = vpop.f32.mrb[0].mxu0
    %v1359 = vadd.f32 %v315, %v1358
    %1360 = vmatprep.mubr.bf16.mxu0 %v97
    %1361 = vmatmul.mubr.bf16.gmra.mrb[0].mxu0 %v96
    %v1362 = vpop.f32.mrb[0].mxu0
    %v1363 = vadd.f32 %v311, %v1362
    %v1364 = vpop.f32.mrb[0].mxu0
    %v1365 = vadd.f32 %v315, %v1364
    %v1366 = vpop.f32.mrb[0].mxu0
    %v1367 = vadd.f32 %v311, %v1366
    %v1368 = vpop.f32.mrb[0].mxu0
    %v1369 = vadd.f32 %v315, %v1368
    %1370 = vmatprep.mubr.bf16.mxu0 %v104
    %1371 = vmatmul.mubr.bf16.gmra.mrb[0].mxu0 %v103
    %v1372 = vpop.f32.mrb[0].mxu0
    %v1373 = vadd.f32 %v311, %v1372
    %v1374 = vpop.f32.mrb[0].mxu0
    %v1375 = vadd.f32 %v315, %v1374
    %v1376 = vpop.f32.mrb[0].mxu0
    %v1377 = vadd.f32 %v311, %v1376
    %v1378 = vpop.f32.mrb[0].mxu0
    %v1379 = vadd.f32 %v315, %v1378
    %1380 = vdwg.mxu0
    %1381 = vmatprep.subr.bf16.mxu0 %v981
    %1382 = vmatpush1.bf16.msra.mxu0 %v980
    %1383 = vmatprep.subr.bf16.mxu0 %v985
    %1384 = vmatpush1.bf16.msra.mxu0 %v984
    %1385 = vmatprep.subr.bf16.mxu0 %v989
    %1386 = vmatpush1.bf16.msra.mxu0 %v988
    %1387 = vmatprep.subr.bf16.mxu0 %v993
    %1388 = vmatpush1.bf16.msra.mxu0 %v992
    %1389 = vmatprep.subr.bf16.mxu0 %v997
    %1390 = vmatpush1.bf16.msra.mxu0 %v996
    %1391 = vmatprep.subr.bf16.mxu0 %v1001
    %1392 = vmatpush1.bf16.msra.mxu0 %v1000
    %1393 = vmatprep.subr.bf16.mxu0 %v1005
    %1394 = vmatpush1.bf16.msra.mxu0 %v1004
    %1395 = vmatprep.subr.bf16.mxu0 %v1009
    %1396 = vmatpush1.bf16.msra.mxu0 %v1008
    %1397 = vmatprep.subr.bf16.mxu0 %v1013
    %1398 = vmatpush1.bf16.msra.mxu0 %v1012
    %1399 = vmatprep.subr.bf16.mxu0 %v1017
    %1400 = vmatpush1.bf16.msra.mxu0 %v1016
    %1401 = vmatprep.subr.bf16.mxu0 %v1021
    %1402 = vmatpush1.bf16.msra.mxu0 %v1020
    %1403 = vmatprep.subr.bf16.mxu0 %v1025
    %1404 = vmatpush1.bf16.msra.mxu0 %v1024
    %1405 = vmatprep.subr.bf16.mxu0 %v1029
    %1406 = vmatpush1.bf16.msra.mxu0 %v1028
    %1407 = vmatprep.subr.bf16.mxu0 %v1033
    %1408 = vmatpush1.bf16.msra.mxu0 %v1032
    %1409 = vmatprep.subr.bf16.mxu0 %v1037
    %1410 = vmatpush1.bf16.msra.mxu0 %v1036
    %1411 = vmatprep.subr.bf16.mxu0 %v1041
    %1412 = vmatpush1.bf16.msra.mxu0 %v1040
    %1413 = vmatprep.mubr.bf16.mxu0 %v92
    %1414 = vmatmul.mubr.bf16.gmra.mrb[0].mxu0 %v91
    %v1415 = vpop.f32.mrb[0].mxu0
    %v1416 = vadd.f32 %v1353, %v1415
    %v1417 = vpop.f32.mrb[0].mxu0
    %v1418 = vadd.f32 %v1355, %v1417
    %v1419 = vpop.f32.mrb[0].mxu0
    %v1420 = vadd.f32 %v1357, %v1419
    %v1421 = vpop.f32.mrb[0].mxu0
    %v1422 = vadd.f32 %v1359, %v1421
    %1423 = vmatprep.mubr.bf16.mxu0 %v99
    %1424 = vmatmul.mubr.bf16.gmra.mrb[0].mxu0 %v98
    %v1425 = vpop.f32.mrb[0].mxu0
    %v1426 = vadd.f32 %v1363, %v1425
    %v1427 = vpop.f32.mrb[0].mxu0
    %v1428 = vadd.f32 %v1365, %v1427
    %v1429 = vpop.f32.mrb[0].mxu0
    %v1430 = vadd.f32 %v1367, %v1429
    %v1431 = vpop.f32.mrb[0].mxu0
    %v1432 = vadd.f32 %v1369, %v1431
    %1433 = vmatprep.mubr.bf16.mxu0 %v106
    %1434 = vmatmul.mubr.bf16.gmra.mrb[0].mxu0 %v105
    %v1435 = vpop.f32.mrb[0].mxu0
    %v1436 = vadd.f32 %v1373, %v1435
    %v1437 = vpop.f32.mrb[0].mxu0
    %v1438 = vadd.f32 %v1375, %v1437
    %v1439 = vpop.f32.mrb[0].mxu0
    %v1440 = vadd.f32 %v1377, %v1439
    %v1441 = vpop.f32.mrb[0].mxu0
    %v1442 = vadd.f32 %v1379, %v1441
    %1443 = vdwg.mxu0
    %1444 = vmatprep.subr.bf16.mxu0 %v1045
    %1445 = vmatpush1.bf16.msra.mxu0 %v1044
    %1446 = vmatprep.subr.bf16.mxu0 %v1049
    %1447 = vmatpush1.bf16.msra.mxu0 %v1048
    %1448 = vmatprep.subr.bf16.mxu0 %v1053
    %1449 = vmatpush1.bf16.msra.mxu0 %v1052
    %1450 = vmatprep.subr.bf16.mxu0 %v1057
    %1451 = vmatpush1.bf16.msra.mxu0 %v1056
    %1452 = vmatprep.subr.bf16.mxu0 %v1061
    %1453 = vmatpush1.bf16.msra.mxu0 %v1060
    %1454 = vmatprep.subr.bf16.mxu0 %v1065
    %1455 = vmatpush1.bf16.msra.mxu0 %v1064
    %1456 = vmatprep.subr.bf16.mxu0 %v1069
    %1457 = vmatpush1.bf16.msra.mxu0 %v1068
    %1458 = vmatprep.subr.bf16.mxu0 %v1073
    %1459 = vmatpush1.bf16.msra.mxu0 %v1072
    %1460 = vmatprep.subr.bf16.mxu0 %v1077
    %1461 = vmatpush1.bf16.msra.mxu0 %v1076
    %1462 = vmatprep.subr.bf16.mxu0 %v1081
    %1463 = vmatpush1.bf16.msra.mxu0 %v1080
    %1464 = vmatprep.subr.bf16.mxu0 %v1085
    %1465 = vmatpush1.bf16.msra.mxu0 %v1084
    %1466 = vmatprep.subr.bf16.mxu0 %v1089
    %1467 = vmatpush1.bf16.msra.mxu0 %v1088
    %1468 = vmatprep.subr.bf16.mxu0 %v1093
    %1469 = vmatpush1.bf16.msra.mxu0 %v1092
    %1470 = vmatprep.subr.bf16.mxu0 %v1097
    %1471 = vmatpush1.bf16.msra.mxu0 %v1096
    %1472 = vmatprep.subr.bf16.mxu0 %v1101
    %1473 = vmatpush1.bf16.msra.mxu0 %v1100
    %1474 = vmatprep.subr.bf16.mxu0 %v1105
    %1475 = vmatpush1.bf16.msra.mxu0 %v1104
    %1476 = vmatprep.mubr.bf16.mxu0 %v94
    %1477 = vmatmul.mubr.bf16.gmra.mrb[0].mxu0 %v93
    %v1478 = vpop.f32.mrb[0].mxu0
    %v1479 = vadd.f32 %v1416, %v1478
    %v1480 = vpop.f32.mrb[0].mxu0
    %v1481 = vadd.f32 %v1418, %v1480
    %v1482 = vpop.f32.mrb[0].mxu0
    %v1483 = vadd.f32 %v1420, %v1482
    %v1484 = vpop.f32.mrb[0].mxu0
    %v1485 = vadd.f32 %v1422, %v1484
    %1486 = vmatprep.mubr.bf16.mxu0 %v101
    %1487 = vmatmul.mubr.bf16.gmra.mrb[0].mxu0 %v100
    %v1488 = vpop.f32.mrb[0].mxu0
    %v1489 = vadd.f32 %v1426, %v1488
    %v1490 = vpop.f32.mrb[0].mxu0
    %v1491 = vadd.f32 %v1428, %v1490
    %v1492 = vpop.f32.mrb[0].mxu0
    %v1493 = vadd.f32 %v1430, %v1492
    %v1494 = vpop.f32.mrb[0].mxu0
    %v1495 = vadd.f32 %v1432, %v1494
    %1496 = vmatprep.mubr.bf16.mxu0 %v108
    %1497 = vmatmul.mubr.bf16.gmra.mrb[0].mxu0 %v107
    %v1498 = vpop.f32.mrb[0].mxu0
    %v1499 = vadd.f32 %v1436, %v1498
    %v1500 = vpop.f32.mrb[0].mxu0
    %v1501 = vadd.f32 %v1438, %v1500
    %v1502 = vpop.f32.mrb[0].mxu0
    %v1503 = vadd.f32 %v1440, %v1502
    %v1504 = vpop.f32.mrb[0].mxu0
    %v1505 = vadd.f32 %v1442, %v1504
    %1506 = vdwg.mxu0
    %1507 = vmatprep.subr.bf16.mxu0 %v1109
    %1508 = vmatpush1.bf16.msra.mxu0 %v1108
    %1509 = vmatprep.subr.bf16.mxu0 0
    %1510 = vmatpush1.bf16.msra.mxu0 0
    %1511 = vmatprep.subr.bf16.mxu0 0
    %1512 = vmatpush1.bf16.msra.mxu0 0
    %1513 = vmatprep.subr.bf16.mxu0 0
    %1514 = vmatpush1.bf16.msra.mxu0 0
    %1515 = vmatprep.subr.bf16.mxu0 0
    %1516 = vmatpush1.bf16.msra.mxu0 0
    %1517 = vmatprep.subr.bf16.mxu0 0
    %1518 = vmatpush1.bf16.msra.mxu0 0
    %1519 = vmatprep.subr.bf16.mxu0 0
    %1520 = vmatpush1.bf16.msra.mxu0 0
    %1521 = vmatprep.subr.bf16.mxu0 0
    %1522 = vmatpush1.bf16.msra.mxu0 0
    %1523 = vmatprep.subr.bf16.mxu0 0
    %1524 = vmatpush1.bf16.msra.mxu0 0
    %1525 = vmatprep.subr.bf16.mxu0 0
    %1526 = vmatpush1.bf16.msra.mxu0 0
    %1527 = vmatprep.subr.bf16.mxu0 0
    %1528 = vmatpush1.bf16.msra.mxu0 0
    %1529 = vmatprep.subr.bf16.mxu0 0
    %1530 = vmatpush1.bf16.msra.mxu0 0
    %1531 = vmatprep.subr.bf16.mxu0 0
    %1532 = vmatpush1.bf16.msra.mxu0 0
    %1533 = vmatprep.subr.bf16.mxu0 0
    %1534 = vmatpush1.bf16.msra.mxu0 0
    %1535 = vmatprep.subr.bf16.mxu0 0
    %1536 = vmatpush1.bf16.msra.mxu0 0
    %1537 = vmatprep.subr.bf16.mxu0 0
    %1538 = vmatpush1.bf16.msra.mxu0 0
    %1539 = vmatprep.mubr.bf16.mxu0 0
    %1540 = vmatmul.mubr.bf16.gmra.mrb[0].mxu0 %v1310
    %v1541 = vpop.f32.mrb[0].mxu0
    %v1542 = vadd.f32 %v1479, %v1541
    %v1543 = vpop.f32.mrb[0].mxu0
    %v1544 = vadd.f32 %v1481, %v1543
    %v1545 = vpop.f32.mrb[0].mxu0
    %v1546 = vadd.f32 %v1483, %v1545
    %v1547 = vpop.f32.mrb[0].mxu0
    %v1548 = vadd.f32 %v1485, %v1547
    %1549 = vmatprep.mubr.bf16.mxu0 0
    %1550 = vmatmul.mubr.bf16.gmra.mrb[0].mxu0 %v1313
    %v1551 = vpop.f32.mrb[0].mxu0
    %v1552 = vadd.f32 %v1489, %v1551
    %v1553 = vpop.f32.mrb[0].mxu0
    %v1554 = vadd.f32 %v1491, %v1553
    %v1555 = vpop.f32.mrb[0].mxu0
    %v1556 = vadd.f32 %v1493, %v1555
    %v1557 = vpop.f32.mrb[0].mxu0
    %v1558 = vadd.f32 %v1495, %v1557
    %1559 = vmatprep.mubr.bf16.mxu0 0
    %1560 = vmatmul.mubr.bf16.gmra.mrb[0].mxu0 %v1316
    %v1561 = vpop.f32.mrb[0].mxu0
    %v1562 = vadd.f32 %v1499, %v1561
    %v1563 = vpop.f32.mrb[0].mxu0
    %v1564 = vadd.f32 %v1501, %v1563
    %v1565 = vpop.f32.mrb[0].mxu0
    %v1566 = vadd.f32 %v1503, %v1565
    %v1567 = vpop.f32.mrb[0].mxu0
    %v1568 = vadd.f32 %v1505, %v1567
    %1569 = vdwg.mxu0
    %1570 = vmatprep.subr.bf16.mxu0 %v919
    %1571 = vmatpush1.bf16.msra.mxu0 %v918
    %1572 = vmatprep.subr.bf16.mxu0 %v923
    %1573 = vmatpush1.bf16.msra.mxu0 %v922
    %1574 = vmatprep.subr.bf16.mxu0 %v927
    %1575 = vmatpush1.bf16.msra.mxu0 %v926
    %1576 = vmatprep.subr.bf16.mxu0 %v931
    %1577 = vmatpush1.bf16.msra.mxu0 %v930
    %1578 = vmatprep.subr.bf16.mxu0 %v935
    %1579 = vmatpush1.bf16.msra.mxu0 %v934
    %1580 = vmatprep.subr.bf16.mxu0 %v939
    %1581 = vmatpush1.bf16.msra.mxu0 %v938
    %1582 = vmatprep.subr.bf16.mxu0 %v943
    %1583 = vmatpush1.bf16.msra.mxu0 %v942
    %1584 = vmatprep.subr.bf16.mxu0 %v947
    %1585 = vmatpush1.bf16.msra.mxu0 %v946
    %1586 = vmatprep.subr.bf16.mxu0 %v951
    %1587 = vmatpush1.bf16.msra.mxu0 %v950
    %1588 = vmatprep.subr.bf16.mxu0 %v955
    %1589 = vmatpush1.bf16.msra.mxu0 %v954
    %1590 = vmatprep.subr.bf16.mxu0 %v959
    %1591 = vmatpush1.bf16.msra.mxu0 %v958
    %1592 = vmatprep.subr.bf16.mxu0 %v963
    %1593 = vmatpush1.bf16.msra.mxu0 %v962
    %1594 = vmatprep.subr.bf16.mxu0 %v967
    %1595 = vmatpush1.bf16.msra.mxu0 %v966
    %1596 = vmatprep.subr.bf16.mxu0 %v971
    %1597 = vmatpush1.bf16.msra.mxu0 %v970
    %1598 = vmatprep.subr.bf16.mxu0 %v975
    %1599 = vmatpush1.bf16.msra.mxu0 %v974
    %1600 = vmatprep.subr.bf16.mxu0 %v979
    %1601 = vmatpush1.bf16.msra.mxu0 %v978
    %1602 = vmatprep.mubr.bf16.mxu0 %v90
    %1603 = vmatmul.mubr.bf16.gmra.mrb[0].mxu0 %v89
    %v1604 = vpop.f32.mrb[0].mxu0
    %v1605 = vadd.f32 %v319, %v1604
    %v1606 = vpop.f32.mrb[0].mxu0
    %v1607 = vadd.f32 %v323, %v1606
    %v1608 = vpop.f32.mrb[0].mxu0
    %v1609 = vadd.f32 %v319, %v1608
    %v1610 = vpop.f32.mrb[0].mxu0
    %v1611 = vadd.f32 %v323, %v1610
    %1612 = vmatprep.mubr.bf16.mxu0 %v97
    %1613 = vmatmul.mubr.bf16.gmra.mrb[0].mxu0 %v96
    %v1614 = vpop.f32.mrb[0].mxu0
    %v1615 = vadd.f32 %v319, %v1614
    %v1616 = vpop.f32.mrb[0].mxu0
    %v1617 = vadd.f32 %v323, %v1616
    %v1618 = vpop.f32.mrb[0].mxu0
    %v1619 = vadd.f32 %v319, %v1618
    %v1620 = vpop.f32.mrb[0].mxu0
    %v1621 = vadd.f32 %v323, %v1620
    %1622 = vmatprep.mubr.bf16.mxu0 %v104
    %1623 = vmatmul.mubr.bf16.gmra.mrb[0].mxu0 %v103
    %v1624 = vpop.f32.mrb[0].mxu0
    %v1625 = vadd.f32 %v319, %v1624
    %v1626 = vpop.f32.mrb[0].mxu0
    %v1627 = vadd.f32 %v323, %v1626
    %v1628 = vpop.f32.mrb[0].mxu0
    %v1629 = vadd.f32 %v319, %v1628
    %v1630 = vpop.f32.mrb[0].mxu0
    %v1631 = vadd.f32 %v323, %v1630
    %1632 = vdwg.mxu0
    %1633 = vmatprep.subr.bf16.mxu0 %v983
    %1634 = vmatpush1.bf16.msra.mxu0 %v982
    %1635 = vmatprep.subr.bf16.mxu0 %v987
    %1636 = vmatpush1.bf16.msra.mxu0 %v986
    %1637 = vmatprep.subr.bf16.mxu0 %v991
    %1638 = vmatpush1.bf16.msra.mxu0 %v990
    %1639 = vmatprep.subr.bf16.mxu0 %v995
    %1640 = vmatpush1.bf16.msra.mxu0 %v994
    %1641 = vmatprep.subr.bf16.mxu0 %v999
    %1642 = vmatpush1.bf16.msra.mxu0 %v998
    %1643 = vmatprep.subr.bf16.mxu0 %v1003
    %1644 = vmatpush1.bf16.msra.mxu0 %v1002
    %1645 = vmatprep.subr.bf16.mxu0 %v1007
    %1646 = vmatpush1.bf16.msra.mxu0 %v1006
    %1647 = vmatprep.subr.bf16.mxu0 %v1011
    %1648 = vmatpush1.bf16.msra.mxu0 %v1010
    %1649 = vmatprep.subr.bf16.mxu0 %v1015
    %1650 = vmatpush1.bf16.msra.mxu0 %v1014
    %1651 = vmatprep.subr.bf16.mxu0 %v1019
    %1652 = vmatpush1.bf16.msra.mxu0 %v1018
    %1653 = vmatprep.subr.bf16.mxu0 %v1023
    %1654 = vmatpush1.bf16.msra.mxu0 %v1022
    %1655 = vmatprep.subr.bf16.mxu0 %v1027
    %1656 = vmatpush1.bf16.msra.mxu0 %v1026
    %1657 = vmatprep.subr.bf16.mxu0 %v1031
    %1658 = vmatpush1.bf16.msra.mxu0 %v1030
    %1659 = vmatprep.subr.bf16.mxu0 %v1035
    %1660 = vmatpush1.bf16.msra.mxu0 %v1034
    %1661 = vmatprep.subr.bf16.mxu0 %v1039
    %1662 = vmatpush1.bf16.msra.mxu0 %v1038
    %1663 = vmatprep.subr.bf16.mxu0 %v1043
    %1664 = vmatpush1.bf16.msra.mxu0 %v1042
    %1665 = vmatprep.mubr.bf16.mxu0 %v92
    %1666 = vmatmul.mubr.bf16.gmra.mrb[0].mxu0 %v91
    %v1667 = vpop.f32.mrb[0].mxu0
    %v1668 = vadd.f32 %v1605, %v1667
    %v1669 = vpop.f32.mrb[0].mxu0
    %v1670 = vadd.f32 %v1607, %v1669
    %v1671 = vpop.f32.mrb[0].mxu0
    %v1672 = vadd.f32 %v1609, %v1671
    %v1673 = vpop.f32.mrb[0].mxu0
    %v1674 = vadd.f32 %v1611, %v1673
    %1675 = vmatprep.mubr.bf16.mxu0 %v99
    %1676 = vmatmul.mubr.bf16.gmra.mrb[0].mxu0 %v98
    %v1677 = vpop.f32.mrb[0].mxu0
    %v1678 = vadd.f32 %v1615, %v1677
    %v1679 = vpop.f32.mrb[0].mxu0
    %v1680 = vadd.f32 %v1617, %v1679
    %v1681 = vpop.f32.mrb[0].mxu0
    %v1682 = vadd.f32 %v1619, %v1681
    %v1683 = vpop.f32.mrb[0].mxu0
    %v1684 = vadd.f32 %v1621, %v1683
    %1685 = vmatprep.mubr.bf16.mxu0 %v106
    %1686 = vmatmul.mubr.bf16.gmra.mrb[0].mxu0 %v105
    %v1687 = vpop.f32.mrb[0].mxu0
    %v1688 = vadd.f32 %v1625, %v1687
    %v1689 = vpop.f32.mrb[0].mxu0
    %v1690 = vadd.f32 %v1627, %v1689
    %v1691 = vpop.f32.mrb[0].mxu0
    %v1692 = vadd.f32 %v1629, %v1691
    %v1693 = vpop.f32.mrb[0].mxu0
    %v1694 = vadd.f32 %v1631, %v1693
    %1695 = vdwg.mxu0
    %1696 = vmatprep.subr.bf16.mxu0 %v1047
    %1697 = vmatpush1.bf16.msra.mxu0 %v1046
    %1698 = vmatprep.subr.bf16.mxu0 %v1051
    %1699 = vmatpush1.bf16.msra.mxu0 %v1050
    %1700 = vmatprep.subr.bf16.mxu0 %v1055
    %1701 = vmatpush1.bf16.msra.mxu0 %v1054
    %1702 = vmatprep.subr.bf16.mxu0 %v1059
    %1703 = vmatpush1.bf16.msra.mxu0 %v1058
    %1704 = vmatprep.subr.bf16.mxu0 %v1063
    %1705 = vmatpush1.bf16.msra.mxu0 %v1062
    %1706 = vmatprep.subr.bf16.mxu0 %v1067
    %1707 = vmatpush1.bf16.msra.mxu0 %v1066
    %1708 = vmatprep.subr.bf16.mxu0 %v1071
    %1709 = vmatpush1.bf16.msra.mxu0 %v1070
    %1710 = vmatprep.subr.bf16.mxu0 %v1075
    %1711 = vmatpush1.bf16.msra.mxu0 %v1074
    %1712 = vmatprep.subr.bf16.mxu0 %v1079
    %1713 = vmatpush1.bf16.msra.mxu0 %v1078
    %1714 = vmatprep.subr.bf16.mxu0 %v1083
    %1715 = vmatpush1.bf16.msra.mxu0 %v1082
    %1716 = vmatprep.subr.bf16.mxu0 %v1087
    %1717 = vmatpush1.bf16.msra.mxu0 %v1086
    %1718 = vmatprep.subr.bf16.mxu0 %v1091
    %1719 = vmatpush1.bf16.msra.mxu0 %v1090
    %1720 = vmatprep.subr.bf16.mxu0 %v1095
    %1721 = vmatpush1.bf16.msra.mxu0 %v1094
    %1722 = vmatprep.subr.bf16.mxu0 %v1099
    %1723 = vmatpush1.bf16.msra.mxu0 %v1098
    %1724 = vmatprep.subr.bf16.mxu0 %v1103
    %1725 = vmatpush1.bf16.msra.mxu0 %v1102
    %1726 = vmatprep.subr.bf16.mxu0 %v1107
    %1727 = vmatpush1.bf16.msra.mxu0 %v1106
    %1728 = vmatprep.mubr.bf16.mxu0 %v94
    %1729 = vmatmul.mubr.bf16.gmra.mrb[0].mxu0 %v93
    %v1730 = vpop.f32.mrb[0].mxu0
    %v1731 = vadd.f32 %v1668, %v1730
    %v1732 = vpop.f32.mrb[0].mxu0
    %v1733 = vadd.f32 %v1670, %v1732
    %v1734 = vpop.f32.mrb[0].mxu0
    %v1735 = vadd.f32 %v1672, %v1734
    %v1736 = vpop.f32.mrb[0].mxu0
    %v1737 = vadd.f32 %v1674, %v1736
    %1738 = vmatprep.mubr.bf16.mxu0 %v101
    %1739 = vmatmul.mubr.bf16.gmra.mrb[0].mxu0 %v100
    %v1740 = vpop.f32.mrb[0].mxu0
    %v1741 = vadd.f32 %v1678, %v1740
    %v1742 = vpop.f32.mrb[0].mxu0
    %v1743 = vadd.f32 %v1680, %v1742
    %v1744 = vpop.f32.mrb[0].mxu0
    %v1745 = vadd.f32 %v1682, %v1744
    %v1746 = vpop.f32.mrb[0].mxu0
    %v1747 = vadd.f32 %v1684, %v1746
    %1748 = vmatprep.mubr.bf16.mxu0 %v108
    %1749 = vmatmul.mubr.bf16.gmra.mrb[0].mxu0 %v107
    %v1750 = vpop.f32.mrb[0].mxu0
    %v1751 = vadd.f32 %v1688, %v1750
    %v1752 = vpop.f32.mrb[0].mxu0
    %v1753 = vadd.f32 %v1690, %v1752
    %v1754 = vpop.f32.mrb[0].mxu0
    %v1755 = vadd.f32 %v1692, %v1754
    %v1756 = vpop.f32.mrb[0].mxu0
    %v1757 = vadd.f32 %v1694, %v1756
    %1758 = vdwg.mxu0
    %1759 = vmatprep.subr.bf16.mxu0 %v1111
    %1760 = vmatpush1.bf16.msra.mxu0 %v1110
    %1761 = vmatprep.subr.bf16.mxu0 0
    %1762 = vmatpush1.bf16.msra.mxu0 0
    %1763 = vmatprep.subr.bf16.mxu0 0
    %1764 = vmatpush1.bf16.msra.mxu0 0
    %1765 = vmatprep.subr.bf16.mxu0 0
    %1766 = vmatpush1.bf16.msra.mxu0 0
    %1767 = vmatprep.subr.bf16.mxu0 0
    %1768 = vmatpush1.bf16.msra.mxu0 0
    %1769 = vmatprep.subr.bf16.mxu0 0
    %1770 = vmatpush1.bf16.msra.mxu0 0
    %1771 = vmatprep.subr.bf16.mxu0 0
    %1772 = vmatpush1.bf16.msra.mxu0 0
    %1773 = vmatprep.subr.bf16.mxu0 0
    %1774 = vmatpush1.bf16.msra.mxu0 0
    %1775 = vmatprep.subr.bf16.mxu0 0
    %1776 = vmatpush1.bf16.msra.mxu0 0
    %1777 = vmatprep.subr.bf16.mxu0 0
    %1778 = vmatpush1.bf16.msra.mxu0 0
    %1779 = vmatprep.subr.bf16.mxu0 0
    %1780 = vmatpush1.bf16.msra.mxu0 0
    %1781 = vmatprep.subr.bf16.mxu0 0
    %1782 = vmatpush1.bf16.msra.mxu0 0
    %1783 = vmatprep.subr.bf16.mxu0 0
    %1784 = vmatpush1.bf16.msra.mxu0 0
    %1785 = vmatprep.subr.bf16.mxu0 0
    %1786 = vmatpush1.bf16.msra.mxu0 0
    %1787 = vmatprep.subr.bf16.mxu0 0
    %1788 = vmatpush1.bf16.msra.mxu0 0
    %1789 = vmatprep.subr.bf16.mxu0 0
    %1790 = vmatpush1.bf16.msra.mxu0 0
    %1791 = vmatprep.mubr.bf16.mxu0 0
    %1792 = vmatmul.mubr.bf16.gmra.mrb[0].mxu0 %v1310
    %v1793 = vpop.f32.mrb[0].mxu0
    %v1794 = vadd.f32 %v1731, %v1793
    %v1795 = vpop.f32.mrb[0].mxu0
    %v1796 = vadd.f32 %v1733, %v1795
    %v1797 = vpop.f32.mrb[0].mxu0
    %v1798 = vadd.f32 %v1735, %v1797
    %v1799 = vpop.f32.mrb[0].mxu0
    %v1800 = vadd.f32 %v1737, %v1799
    %1801 = vmatprep.mubr.bf16.mxu0 0
    %1802 = vmatmul.mubr.bf16.gmra.mrb[0].mxu0 %v1313
    %v1803 = vpop.f32.mrb[0].mxu0
    %v1804 = vadd.f32 %v1741, %v1803
    %v1805 = vpop.f32.mrb[0].mxu0
    %v1806 = vadd.f32 %v1743, %v1805
    %v1807 = vpop.f32.mrb[0].mxu0
    %v1808 = vadd.f32 %v1745, %v1807
    %v1809 = vpop.f32.mrb[0].mxu0
    %v1810 = vadd.f32 %v1747, %v1809
    %1811 = vmatprep.mubr.bf16.mxu0 0
    %1812 = vmatmul.mubr.bf16.gmra.mrb[0].mxu0 %v1316
    %v1813 = vpop.f32.mrb[0].mxu0
    %v1814 = vadd.f32 %v1751, %v1813
    %v1815 = vpop.f32.mrb[0].mxu0
    %v1816 = vadd.f32 %v1753, %v1815
    %v1817 = vpop.f32.mrb[0].mxu0
    %v1818 = vadd.f32 %v1755, %v1817
    %v1819 = vpop.f32.mrb[0].mxu0
    %v1820 = vadd.f32 %v1757, %v1819
    %1821 = vdwg.mxu0
    %v1822 = vmax.f32 %v1542, 0.0
    %v1823 = vmax.f32 %v1544, 0.0
    %v1824 = vmax.f32 %v1794, 0.0
    %v1825 = vmax.f32 %v1796, 0.0
    %v1826 = vmax.f32 %v1546, 0.0
    %v1827 = vmax.f32 %v1548, 0.0
    %v1828 = vmax.f32 %v1798, 0.0
    %v1829 = vmax.f32 %v1800, 0.0
    %v1830 = vmax.f32 %v1552, 0.0
    %v1831 = vmax.f32 %v1554, 0.0
    %v1832 = vmax.f32 %v1804, 0.0
    %v1833 = vmax.f32 %v1806, 0.0
    %v1834 = vmax.f32 %v1556, 0.0
    %v1835 = vmax.f32 %v1558, 0.0
    %v1836 = vmax.f32 %v1808, 0.0
    %v1837 = vmax.f32 %v1810, 0.0
    %v1838 = vmax.f32 %v1562, 0.0
    %v1839 = vmax.f32 %v1564, 0.0
    %v1840 = vmax.f32 %v1814, 0.0
    %v1841 = vmax.f32 %v1816, 0.0
    %v1842 = vmax.f32 %v1566, 0.0
    %v1843 = vmax.f32 %v1568, 0.0
    %v1844 = vmax.f32 %v1818, 0.0
    %v1845 = vmax.f32 %v1820, 0.0
    %v1846 = vpack.c.bf16 %v1826, %v1822
    %v1847 = vpack.c.bf16 %v1827, %v1823
    %v1848 = vpack.c.bf16 %v1828, %v1824
    %v1849 = vpack.c.bf16 %v1829, %v1825
    %v1850 = vpack.c.bf16 %v1834, %v1830
    %v1851 = vpack.c.bf16 %v1835, %v1831
    %v1852 = vpack.c.bf16 %v1836, %v1832
    %v1853 = vpack.c.bf16 %v1837, %v1833
    %v1854 = vpack.c.bf16 %v1842, %v1838
    %v1855 = vpack.c.bf16 %v1843, %v1839
    %v1856 = vpack.c.bf16 %v1844, %v1840
    %v1857 = vpack.c.bf16 %v1845, %v1841
    %v1858 = vld [vmem:[%s3] sm:$0xff]
    %v1859 = vld [vmem:[%s3 + $0x8] sm:$0xff]
    %v1860 = vld [vmem:[%s3 + $0x10] sm:$0xff]
    %v1861 = vld [vmem:[%s3 + $0x18] sm:$0xff]
    %v1862 = vld [vmem:[%s3 + $0x20] sm:$0xff]
    %v1863 = vld [vmem:[%s3 + $0x28] sm:$0xff]
    %v1864 = vld [vmem:[%s3 + $0x30] sm:$0xff]
    %v1865 = vld [vmem:[%s3 + $0x38] sm:$0xff]
    %v1866 = vld [vmem:[%s3 + $0x40] sm:$0xff]
    %v1867 = vld [vmem:[%s3 + $0x48] sm:$0xff]
    %v1868 = vld [vmem:[%s3 + $0x50] sm:$0xff]
    %v1869 = vld [vmem:[%s3 + $0x58] sm:$0xff]
    %v1870 = vld [vmem:[%s3 + $0x60] sm:$0xff]
    %v1871 = vld [vmem:[%s3 + $0x68] sm:$0xff]
    %v1872 = vld [vmem:[%s3 + $0x70] sm:$0xff]
    %v1873 = vld [vmem:[%s3 + $0x78] sm:$0xff]
    %v1874 = vld [vmem:[%s3 + $0x80] sm:$0xff]
    %v1875 = vld [vmem:[%s3 + $0x88] sm:$0xff]
    %v1876 = vld [vmem:[%s3 + $0x90] sm:$0xff]
    %v1877 = vld [vmem:[%s3 + $0x98] sm:$0xff]
    %v1878 = vld [vmem:[%s3 + $0xa0] sm:$0xff]
    %v1879 = vld [vmem:[%s3 + $0xa8] sm:$0xff]
    %v1880 = vld [vmem:[%s3 + $0xb0] sm:$0xff]
    %v1881 = vld [vmem:[%s3 + $0xb8] sm:$0xff]
    %v1882 = vld [vmem:[%s3 + $0xc0] sm:$0xff]
    %v1883 = vld [vmem:[%s3 + $0xc8] sm:$0xff]
    %v1884 = vld [vmem:[%s3 + $0xd0] sm:$0xff]
    %v1885 = vld [vmem:[%s3 + $0xd8] sm:$0xff]
    %v1886 = vld [vmem:[%s3 + $0xe0] sm:$0xff]
    %v1887 = vld [vmem:[%s3 + $0xe8] sm:$0xff]
    %v1888 = vld [vmem:[%s3 + $0xf0] sm:$0xff]
    %v1889 = vld [vmem:[%s3 + $0xf8] sm:$0xff]
    %v1890 = vld [vmem:[%s3 + $0x100] sm:$0xff]
    %v1891 = vld [vmem:[%s3 + $0x108] sm:$0xff]
    %v1892 = vld [vmem:[%s3 + $0x110] sm:$0xff]
    %v1893 = vld [vmem:[%s3 + $0x118] sm:$0xff]
    %v1894 = vld [vmem:[%s3 + $0x120] sm:$0xff]
    %v1895 = vld [vmem:[%s3 + $0x128] sm:$0xff]
    %v1896 = vld [vmem:[%s3 + $0x130] sm:$0xff]
    %v1897 = vld [vmem:[%s3 + $0x138] sm:$0xff]
    %v1898 = vld [vmem:[%s3 + $0x140] sm:$0xff]
    %v1899 = vld [vmem:[%s3 + $0x148] sm:$0xff]
    %v1900 = vld [vmem:[%s3 + $0x150] sm:$0xff]
    %v1901 = vld [vmem:[%s3 + $0x158] sm:$0xff]
    %v1902 = vld [vmem:[%s3 + $0x160] sm:$0xff]
    %v1903 = vld [vmem:[%s3 + $0x168] sm:$0xff]
    %v1904 = vld [vmem:[%s3 + $0x170] sm:$0xff]
    %v1905 = vld [vmem:[%s3 + $0x178] sm:$0xff]
    %v1906 = vld [vmem:[%s3 + $0x180] sm:$0xff]
    %v1907 = vld [vmem:[%s3 + $0x188] sm:$0xff]
    %v1908 = vld [vmem:[%s3 + $0x190] sm:$0xff]
    %v1909 = vld [vmem:[%s3 + $0x198] sm:$0xff]
    %v1910 = vld [vmem:[%s3 + $0x1a0] sm:$0xff]
    %v1911 = vld [vmem:[%s3 + $0x1a8] sm:$0xff]
    %v1912 = vld [vmem:[%s3 + $0x1b0] sm:$0xff]
    %v1913 = vld [vmem:[%s3 + $0x1b8] sm:$0xff]
    %v1914 = vld [vmem:[%s3 + $0x1c0] sm:$0xff]
    %v1915 = vld [vmem:[%s3 + $0x1c8] sm:$0xff]
    %v1916 = vld [vmem:[%s3 + $0x1d0] sm:$0xff]
    %v1917 = vld [vmem:[%s3 + $0x1d8] sm:$0xff]
    %v1918 = vld [vmem:[%s3 + $0x1e0] sm:$0xff]
    %v1919 = vld [vmem:[%s3 + $0x1e8] sm:$0xff]
    %v1920 = vld [vmem:[%s3 + $0x1f0] sm:$0xff]
    %v1921 = vld [vmem:[%s3 + $0x1f8] sm:$0xff]
    %v1922 = vld [vmem:[%s4] sm:$0x3]
    %v1924 = vlaneseq
    %v1925 = vshrl.u32 %v1924, 7
    %v1926 = vsub.s32 0, %v1925
    %v1927 = vrot.slane %v1922, %v1926
    %v1928 = vlaneseq
    %v1929 = vshrl.u32 %v1928, 7
    %v1930 = vsub.s32 1, %v1929
    %v1931 = vrot.slane %v1922, %v1930
    %v1998 = vunpack.c.l.b16 %v1858
    %v1999 = vunpack.c.h.b16 %v1858
    %v2000 = vunpack.c.l.b16 %v1859
    %v2001 = vunpack.c.h.b16 %v1859
    %v2002 = vunpack.c.l.b16 %v1860
    %v2003 = vunpack.c.h.b16 %v1860
    %v2004 = vunpack.c.l.b16 %v1861
    %v2005 = vunpack.c.h.b16 %v1861
    %v2006 = vunpack.c.l.b16 %v1862
    %v2007 = vunpack.c.h.b16 %v1862
    %v2008 = vunpack.c.l.b16 %v1863
    %v2009 = vunpack.c.h.b16 %v1863
    %v2010 = vunpack.c.l.b16 %v1864
    %v2011 = vunpack.c.h.b16 %v1864
    %v2012 = vunpack.c.l.b16 %v1865
    %v2013 = vunpack.c.h.b16 %v1865
    %v2014 = vunpack.c.l.b16 %v1866
    %v2015 = vunpack.c.h.b16 %v1866
    %v2016 = vunpack.c.l.b16 %v1867
    %v2017 = vunpack.c.h.b16 %v1867
    %v2018 = vunpack.c.l.b16 %v1868
    %v2019 = vunpack.c.h.b16 %v1868
    %v2020 = vunpack.c.l.b16 %v1869
    %v2021 = vunpack.c.h.b16 %v1869
    %v2022 = vunpack.c.l.b16 %v1870
    %v2023 = vunpack.c.h.b16 %v1870
    %v2024 = vunpack.c.l.b16 %v1871
    %v2025 = vunpack.c.h.b16 %v1871
    %v2026 = vunpack.c.l.b16 %v1872
    %v2027 = vunpack.c.h.b16 %v1872
    %v2028 = vunpack.c.l.b16 %v1873
    %v2029 = vunpack.c.h.b16 %v1873
    %v2030 = vunpack.c.l.b16 %v1874
    %v2031 = vunpack.c.h.b16 %v1874
    %v2032 = vunpack.c.l.b16 %v1875
    %v2033 = vunpack.c.h.b16 %v1875
    %v2034 = vunpack.c.l.b16 %v1876
    %v2035 = vunpack.c.h.b16 %v1876
    %v2036 = vunpack.c.l.b16 %v1877
    %v2037 = vunpack.c.h.b16 %v1877
    %v2038 = vunpack.c.l.b16 %v1878
    %v2039 = vunpack.c.h.b16 %v1878
    %v2040 = vunpack.c.l.b16 %v1879
    %v2041 = vunpack.c.h.b16 %v1879
    %v2042 = vunpack.c.l.b16 %v1880
    %v2043 = vunpack.c.h.b16 %v1880
    %v2044 = vunpack.c.l.b16 %v1881
    %v2045 = vunpack.c.h.b16 %v1881
    %v2046 = vunpack.c.l.b16 %v1882
    %v2047 = vunpack.c.h.b16 %v1882
    %v2048 = vunpack.c.l.b16 %v1883
    %v2049 = vunpack.c.h.b16 %v1883
    %v2050 = vunpack.c.l.b16 %v1884
    %v2051 = vunpack.c.h.b16 %v1884
    %v2052 = vunpack.c.l.b16 %v1885
    %v2053 = vunpack.c.h.b16 %v1885
    %v2054 = vunpack.c.l.b16 %v1886
    %v2055 = vunpack.c.h.b16 %v1886
    %v2056 = vunpack.c.l.b16 %v1887
    %v2057 = vunpack.c.h.b16 %v1887
    %v2058 = vunpack.c.l.b16 %v1888
    %v2059 = vunpack.c.h.b16 %v1888
    %v2060 = vunpack.c.l.b16 %v1889
    %v2061 = vunpack.c.h.b16 %v1889
    %v2062 = vunpack.c.l.b16 %v1890
    %v2063 = vunpack.c.h.b16 %v1890
    %v2064 = vunpack.c.l.b16 %v1891
    %v2065 = vunpack.c.h.b16 %v1891
    %v2066 = vunpack.c.l.b16 %v1892
    %v2067 = vunpack.c.h.b16 %v1892
    %v2068 = vunpack.c.l.b16 %v1893
    %v2069 = vunpack.c.h.b16 %v1893
    %v2070 = vunpack.c.l.b16 %v1894
    %v2071 = vunpack.c.h.b16 %v1894
    %v2072 = vunpack.c.l.b16 %v1895
    %v2073 = vunpack.c.h.b16 %v1895
    %v2074 = vunpack.c.l.b16 %v1896
    %v2075 = vunpack.c.h.b16 %v1896
    %v2076 = vunpack.c.l.b16 %v1897
    %v2077 = vunpack.c.h.b16 %v1897
    %v2078 = vunpack.c.l.b16 %v1898
    %v2079 = vunpack.c.h.b16 %v1898
    %v2080 = vunpack.c.l.b16 %v1899
    %v2081 = vunpack.c.h.b16 %v1899
    %v2082 = vunpack.c.l.b16 %v1900
    %v2083 = vunpack.c.h.b16 %v1900
    %v2084 = vunpack.c.l.b16 %v1901
    %v2085 = vunpack.c.h.b16 %v1901
    %v2086 = vunpack.c.l.b16 %v1902
    %v2087 = vunpack.c.h.b16 %v1902
    %v2088 = vunpack.c.l.b16 %v1903
    %v2089 = vunpack.c.h.b16 %v1903
    %v2090 = vunpack.c.l.b16 %v1904
    %v2091 = vunpack.c.h.b16 %v1904
    %v2092 = vunpack.c.l.b16 %v1905
    %v2093 = vunpack.c.h.b16 %v1905
    %v2094 = vunpack.c.l.b16 %v1906
    %v2095 = vunpack.c.h.b16 %v1906
    %v2096 = vunpack.c.l.b16 %v1907
    %v2097 = vunpack.c.h.b16 %v1907
    %v2098 = vunpack.c.l.b16 %v1908
    %v2099 = vunpack.c.h.b16 %v1908
    %v2100 = vunpack.c.l.b16 %v1909
    %v2101 = vunpack.c.h.b16 %v1909
    %v2102 = vunpack.c.l.b16 %v1910
    %v2103 = vunpack.c.h.b16 %v1910
    %v2104 = vunpack.c.l.b16 %v1911
    %v2105 = vunpack.c.h.b16 %v1911
    %v2106 = vunpack.c.l.b16 %v1912
    %v2107 = vunpack.c.h.b16 %v1912
    %v2108 = vunpack.c.l.b16 %v1913
    %v2109 = vunpack.c.h.b16 %v1913
    %v2110 = vunpack.c.l.b16 %v1914
    %v2111 = vunpack.c.h.b16 %v1914
    %v2112 = vunpack.c.l.b16 %v1915
    %v2113 = vunpack.c.h.b16 %v1915
    %v2114 = vunpack.c.l.b16 %v1916
    %v2115 = vunpack.c.h.b16 %v1916
    %v2116 = vunpack.c.l.b16 %v1917
    %v2117 = vunpack.c.h.b16 %v1917
    %v2118 = vunpack.c.l.b16 %v1918
    %v2119 = vunpack.c.h.b16 %v1918
    %v2120 = vunpack.c.l.b16 %v1919
    %v2121 = vunpack.c.h.b16 %v1919
    %v2122 = vunpack.c.l.b16 %v1920
    %v2123 = vunpack.c.h.b16 %v1920
    %v2124 = vunpack.c.l.b16 %v1921
    %v2125 = vunpack.c.h.b16 %v1921
    %v2126 = vpack.c.b16 %v2000, %v1998
    %v2127 = vpack.c.b16 %v2001, %v1999
    %v2128 = vpack.c.b16 %v2004, %v2002
    %v2129 = vpack.c.b16 %v2005, %v2003
    %v2130 = vpack.c.b16 %v2008, %v2006
    %v2131 = vpack.c.b16 %v2009, %v2007
    %v2132 = vpack.c.b16 %v2012, %v2010
    %v2133 = vpack.c.b16 %v2013, %v2011
    %v2134 = vpack.c.b16 %v2016, %v2014
    %v2135 = vpack.c.b16 %v2017, %v2015
    %v2136 = vpack.c.b16 %v2020, %v2018
    %v2137 = vpack.c.b16 %v2021, %v2019
    %v2138 = vpack.c.b16 %v2024, %v2022
    %v2139 = vpack.c.b16 %v2025, %v2023
    %v2140 = vpack.c.b16 %v2028, %v2026
    %v2141 = vpack.c.b16 %v2029, %v2027
    %v2142 = vpack.c.b16 %v2032, %v2030
    %v2143 = vpack.c.b16 %v2033, %v2031
    %v2144 = vpack.c.b16 %v2036, %v2034
    %v2145 = vpack.c.b16 %v2037, %v2035
    %v2146 = vpack.c.b16 %v2040, %v2038
    %v2147 = vpack.c.b16 %v2041, %v2039
    %v2148 = vpack.c.b16 %v2044, %v2042
    %v2149 = vpack.c.b16 %v2045, %v2043
    %v2150 = vpack.c.b16 %v2048, %v2046
    %v2151 = vpack.c.b16 %v2049, %v2047
    %v2152 = vpack.c.b16 %v2052, %v2050
    %v2153 = vpack.c.b16 %v2053, %v2051
    %v2154 = vpack.c.b16 %v2056, %v2054
    %v2155 = vpack.c.b16 %v2057, %v2055
    %v2156 = vpack.c.b16 %v2060, %v2058
    %v2157 = vpack.c.b16 %v2061, %v2059
    %v2158 = vpack.c.b16 %v2064, %v2062
    %v2159 = vpack.c.b16 %v2065, %v2063
    %v2160 = vpack.c.b16 %v2068, %v2066
    %v2161 = vpack.c.b16 %v2069, %v2067
    %v2162 = vpack.c.b16 %v2072, %v2070
    %v2163 = vpack.c.b16 %v2073, %v2071
    %v2164 = vpack.c.b16 %v2076, %v2074
    %v2165 = vpack.c.b16 %v2077, %v2075
    %v2166 = vpack.c.b16 %v2080, %v2078
    %v2167 = vpack.c.b16 %v2081, %v2079
    %v2168 = vpack.c.b16 %v2084, %v2082
    %v2169 = vpack.c.b16 %v2085, %v2083
    %v2170 = vpack.c.b16 %v2088, %v2086
    %v2171 = vpack.c.b16 %v2089, %v2087
    %v2172 = vpack.c.b16 %v2092, %v2090
    %v2173 = vpack.c.b16 %v2093, %v2091
    %v2174 = vpack.c.b16 %v2096, %v2094
    %v2175 = vpack.c.b16 %v2097, %v2095
    %v2176 = vpack.c.b16 %v2100, %v2098
    %v2177 = vpack.c.b16 %v2101, %v2099
    %v2178 = vpack.c.b16 %v2104, %v2102
    %v2179 = vpack.c.b16 %v2105, %v2103
    %v2180 = vpack.c.b16 %v2108, %v2106
    %v2181 = vpack.c.b16 %v2109, %v2107
    %v2182 = vpack.c.b16 %v2112, %v2110
    %v2183 = vpack.c.b16 %v2113, %v2111
    %v2184 = vpack.c.b16 %v2116, %v2114
    %v2185 = vpack.c.b16 %v2117, %v2115
    %v2186 = vpack.c.b16 %v2120, %v2118
    %v2187 = vpack.c.b16 %v2121, %v2119
    %v2188 = vpack.c.b16 %v2124, %v2122
    %v2189 = vpack.c.b16 %v2125, %v2123
    %2254 = vmatprep.subr.bf16.mxu0 %v2127
    %2255 = vmatpush1.bf16.msra.mxu0 %v2126
    %2256 = vmatprep.subr.bf16.mxu0 %v2129
    %2257 = vmatpush1.bf16.msra.mxu0 %v2128
    %2258 = vmatprep.subr.bf16.mxu0 %v2131
    %2259 = vmatpush1.bf16.msra.mxu0 %v2130
    %2260 = vmatprep.subr.bf16.mxu0 %v2133
    %2261 = vmatpush1.bf16.msra.mxu0 %v2132
    %2262 = vmatprep.subr.bf16.mxu0 %v2135
    %2263 = vmatpush1.bf16.msra.mxu0 %v2134
    %2264 = vmatprep.subr.bf16.mxu0 %v2137
    %2265 = vmatpush1.bf16.msra.mxu0 %v2136
    %2266 = vmatprep.subr.bf16.mxu0 %v2139
    %2267 = vmatpush1.bf16.msra.mxu0 %v2138
    %2268 = vmatprep.subr.bf16.mxu0 %v2141
    %2269 = vmatpush1.bf16.msra.mxu0 %v2140
    %2270 = vmatprep.subr.bf16.mxu0 %v2143
    %2271 = vmatpush1.bf16.msra.mxu0 %v2142
    %2272 = vmatprep.subr.bf16.mxu0 %v2145
    %2273 = vmatpush1.bf16.msra.mxu0 %v2144
    %2274 = vmatprep.subr.bf16.mxu0 %v2147
    %2275 = vmatpush1.bf16.msra.mxu0 %v2146
    %2276 = vmatprep.subr.bf16.mxu0 %v2149
    %2277 = vmatpush1.bf16.msra.mxu0 %v2148
    %2278 = vmatprep.subr.bf16.mxu0 %v2151
    %2279 = vmatpush1.bf16.msra.mxu0 %v2150
    %2280 = vmatprep.subr.bf16.mxu0 %v2153
    %2281 = vmatpush1.bf16.msra.mxu0 %v2152
    %2282 = vmatprep.subr.bf16.mxu0 %v2155
    %2283 = vmatpush1.bf16.msra.mxu0 %v2154
    %2284 = vmatprep.subr.bf16.mxu0 %v2157
    %2285 = vmatpush1.bf16.msra.mxu0 %v2156
    %2286 = vmatprep.mubr.bf16.mxu0 %v1847
    %2287 = vmatmul.mubr.bf16.gmra.mrb[0].mxu0 %v1846
    %v2288 = vpop.f32.mrb[0].mxu0
    %v2289 = vadd.f32 %v1927, %v2288
    %v2290 = vpop.f32.mrb[0].mxu0
    %v2291 = vadd.f32 %v1931, %v2290
    %v2292 = vpop.f32.mrb[0].mxu0
    %v2293 = vadd.f32 %v1927, %v2292
    %v2294 = vpop.f32.mrb[0].mxu0
    %v2295 = vadd.f32 %v1931, %v2294
    %2296 = vmatprep.mubr.bf16.mxu0 %v1851
    %2297 = vmatmul.mubr.bf16.gmra.mrb[0].mxu0 %v1850
    %v2298 = vpop.f32.mrb[0].mxu0
    %v2299 = vadd.f32 %v1927, %v2298
    %v2300 = vpop.f32.mrb[0].mxu0
    %v2301 = vadd.f32 %v1931, %v2300
    %v2302 = vpop.f32.mrb[0].mxu0
    %v2303 = vadd.f32 %v1927, %v2302
    %v2304 = vpop.f32.mrb[0].mxu0
    %v2305 = vadd.f32 %v1931, %v2304
    %2306 = vmatprep.mubr.bf16.mxu0 %v1855
    %2307 = vmatmul.mubr.bf16.gmra.mrb[0].mxu0 %v1854
    %v2308 = vpop.f32.mrb[0].mxu0
    %v2309 = vadd.f32 %v1927, %v2308
    %v2310 = vpop.f32.mrb[0].mxu0
    %v2311 = vadd.f32 %v1931, %v2310
    %v2312 = vpop.f32.mrb[0].mxu0
    %v2313 = vadd.f32 %v1927, %v2312
    %v2314 = vpop.f32.mrb[0].mxu0
    %v2315 = vadd.f32 %v1931, %v2314
    %2316 = vdwg.mxu0
    %2317 = vmatprep.subr.bf16.mxu0 %v2159
    %2318 = vmatpush1.bf16.msra.mxu0 %v2158
    %2319 = vmatprep.subr.bf16.mxu0 %v2161
    %2320 = vmatpush1.bf16.msra.mxu0 %v2160
    %2321 = vmatprep.subr.bf16.mxu0 %v2163
    %2322 = vmatpush1.bf16.msra.mxu0 %v2162
    %2323 = vmatprep.subr.bf16.mxu0 %v2165
    %2324 = vmatpush1.bf16.msra.mxu0 %v2164
    %2325 = vmatprep.subr.bf16.mxu0 %v2167
    %2326 = vmatpush1.bf16.msra.mxu0 %v2166
    %2327 = vmatprep.subr.bf16.mxu0 %v2169
    %2328 = vmatpush1.bf16.msra.mxu0 %v2168
    %2329 = vmatprep.subr.bf16.mxu0 %v2171
    %2330 = vmatpush1.bf16.msra.mxu0 %v2170
    %2331 = vmatprep.subr.bf16.mxu0 %v2173
    %2332 = vmatpush1.bf16.msra.mxu0 %v2172
    %2333 = vmatprep.subr.bf16.mxu0 %v2175
    %2334 = vmatpush1.bf16.msra.mxu0 %v2174
    %2335 = vmatprep.subr.bf16.mxu0 %v2177
    %2336 = vmatpush1.bf16.msra.mxu0 %v2176
    %2337 = vmatprep.subr.bf16.mxu0 %v2179
    %2338 = vmatpush1.bf16.msra.mxu0 %v2178
    %2339 = vmatprep.subr.bf16.mxu0 %v2181
    %2340 = vmatpush1.bf16.msra.mxu0 %v2180
    %2341 = vmatprep.subr.bf16.mxu0 %v2183
    %2342 = vmatpush1.bf16.msra.mxu0 %v2182
    %2343 = vmatprep.subr.bf16.mxu0 %v2185
    %2344 = vmatpush1.bf16.msra.mxu0 %v2184
    %2345 = vmatprep.subr.bf16.mxu0 %v2187
    %2346 = vmatpush1.bf16.msra.mxu0 %v2186
    %2347 = vmatprep.subr.bf16.mxu0 %v2189
    %2348 = vmatpush1.bf16.msra.mxu0 %v2188
    %2349 = vmatprep.mubr.bf16.mxu0 %v1849
    %2350 = vmatmul.mubr.bf16.gmra.mrb[0].mxu0 %v1848
    %v2351 = vpop.f32.mrb[0].mxu0
    %v2352 = vadd.f32 %v2289, %v2351
    %v2353 = vpop.f32.mrb[0].mxu0
    %v2354 = vadd.f32 %v2291, %v2353
    %v2355 = vpop.f32.mrb[0].mxu0
    %v2356 = vadd.f32 %v2293, %v2355
    %v2357 = vpop.f32.mrb[0].mxu0
    %v2358 = vadd.f32 %v2295, %v2357
    %2359 = vmatprep.mubr.bf16.mxu0 %v1853
    %2360 = vmatmul.mubr.bf16.gmra.mrb[0].mxu0 %v1852
    %v2361 = vpop.f32.mrb[0].mxu0
    %v2362 = vadd.f32 %v2299, %v2361
    %v2363 = vpop.f32.mrb[0].mxu0
    %v2364 = vadd.f32 %v2301, %v2363
    %v2365 = vpop.f32.mrb[0].mxu0
    %v2366 = vadd.f32 %v2303, %v2365
    %v2367 = vpop.f32.mrb[0].mxu0
    %v2368 = vadd.f32 %v2305, %v2367
    %2369 = vmatprep.mubr.bf16.mxu0 %v1857
    %2370 = vmatmul.mubr.bf16.gmra.mrb[0].mxu0 %v1856
    %v2371 = vpop.f32.mrb[0].mxu0
    %v2372 = vadd.f32 %v2309, %v2371
    %v2373 = vpop.f32.mrb[0].mxu0
    %v2374 = vadd.f32 %v2311, %v2373
    %v2375 = vpop.f32.mrb[0].mxu0
    %v2376 = vadd.f32 %v2313, %v2375
    %v2377 = vpop.f32.mrb[0].mxu0
    %v2378 = vadd.f32 %v2315, %v2377
    %2379 = vdwg.mxu0
    %v2380 = vmax.f32 %v2352, 0.0
    %v2381 = vmax.f32 %v2354, 0.0
    %v2382 = vmax.f32 %v2356, 0.0
    %v2383 = vmax.f32 %v2358, 0.0
    %v2384 = vmax.f32 %v2362, 0.0
    %v2385 = vmax.f32 %v2364, 0.0
    %v2386 = vmax.f32 %v2366, 0.0
    %v2387 = vmax.f32 %v2368, 0.0
    %v2388 = vmax.f32 %v2372, 0.0
    %v2389 = vmax.f32 %v2374, 0.0
    %v2390 = vmax.f32 %v2376, 0.0
    %v2391 = vmax.f32 %v2378, 0.0
    %v2392 = vpack.c.bf16 %v2382, %v2380
    %v2393 = vpack.c.bf16 %v2383, %v2381
    %v2394 = vpack.c.bf16 %v2386, %v2384
    %v2395 = vpack.c.bf16 %v2387, %v2385
    %v2396 = vpack.c.bf16 %v2390, %v2388
    %v2397 = vpack.c.bf16 %v2391, %v2389
    %v2398 = vld [vmem:[%s5] sm:$0xf]
    %v2399 = vld [vmem:[%s5 + $0x4] sm:$0xf]
    %v2400 = vld [vmem:[%s5 + $0x8] sm:$0xf]
    %v2401 = vld [vmem:[%s5 + $0xc] sm:$0xf]
    %v2402 = vld [vmem:[%s5 + $0x10] sm:$0xf]
    %v2403 = vld [vmem:[%s5 + $0x14] sm:$0xf]
    %v2404 = vld [vmem:[%s5 + $0x18] sm:$0xf]
    %v2405 = vld [vmem:[%s5 + $0x1c] sm:$0xf]
    %v2406 = vld [vmem:[%s5 + $0x20] sm:$0xf]
    %v2407 = vld [vmem:[%s5 + $0x24] sm:$0xf]
    %v2408 = vld [vmem:[%s5 + $0x28] sm:$0xf]
    %v2409 = vld [vmem:[%s5 + $0x2c] sm:$0xf]
    %v2410 = vld [vmem:[%s5 + $0x30] sm:$0xf]
    %v2411 = vld [vmem:[%s5 + $0x34] sm:$0xf]
    %v2412 = vld [vmem:[%s5 + $0x38] sm:$0xf]
    %v2413 = vld [vmem:[%s5 + $0x3c] sm:$0xf]
    %v2414 = vld [vmem:[%s5 + $0x40] sm:$0xf]
    %v2415 = vld [vmem:[%s5 + $0x44] sm:$0xf]
    %v2416 = vld [vmem:[%s5 + $0x48] sm:$0xf]
    %v2417 = vld [vmem:[%s5 + $0x4c] sm:$0xf]
    %v2418 = vld [vmem:[%s5 + $0x50] sm:$0xf]
    %v2419 = vld [vmem:[%s5 + $0x54] sm:$0xf]
    %v2420 = vld [vmem:[%s5 + $0x58] sm:$0xf]
    %v2421 = vld [vmem:[%s5 + $0x5c] sm:$0xf]
    %v2422 = vld [vmem:[%s5 + $0x60] sm:$0xf]
    %v2423 = vld [vmem:[%s5 + $0x64] sm:$0xf]
    %v2424 = vld [vmem:[%s5 + $0x68] sm:$0xf]
    %v2425 = vld [vmem:[%s5 + $0x6c] sm:$0xf]
    %v2426 = vld [vmem:[%s5 + $0x70] sm:$0xf]
    %v2427 = vld [vmem:[%s5 + $0x74] sm:$0xf]
    %v2428 = vld [vmem:[%s5 + $0x78] sm:$0xf]
    %v2429 = vld [vmem:[%s5 + $0x7c] sm:$0xf]
    %v2430 = vld [vmem:[%s6] sm:$0x1]
    %v2432 = vlaneseq
    %v2433 = vshrl.u32 %v2432, 7
    %v2434 = vsub.s32 0, %v2433
    %v2435 = vrot.slane %v2430, %v2434
    %v2469 = vunpack.c.l.b16 %v2398
    %v2470 = vunpack.c.l.b16 %v2399
    %v2471 = vunpack.c.l.b16 %v2400
    %v2472 = vunpack.c.l.b16 %v2401
    %v2473 = vunpack.c.l.b16 %v2402
    %v2474 = vunpack.c.l.b16 %v2403
    %v2475 = vunpack.c.l.b16 %v2404
    %v2476 = vunpack.c.l.b16 %v2405
    %v2477 = vunpack.c.l.b16 %v2406
    %v2478 = vunpack.c.l.b16 %v2407
    %v2479 = vunpack.c.l.b16 %v2408
    %v2480 = vunpack.c.l.b16 %v2409
    %v2481 = vunpack.c.l.b16 %v2410
    %v2482 = vunpack.c.l.b16 %v2411
    %v2483 = vunpack.c.l.b16 %v2412
    %v2484 = vunpack.c.l.b16 %v2413
    %v2485 = vunpack.c.l.b16 %v2414
    %v2486 = vunpack.c.l.b16 %v2415
    %v2487 = vunpack.c.l.b16 %v2416
    %v2488 = vunpack.c.l.b16 %v2417
    %v2489 = vunpack.c.l.b16 %v2418
    %v2490 = vunpack.c.l.b16 %v2419
    %v2491 = vunpack.c.l.b16 %v2420
    %v2492 = vunpack.c.l.b16 %v2421
    %v2493 = vunpack.c.l.b16 %v2422
    %v2494 = vunpack.c.l.b16 %v2423
    %v2495 = vunpack.c.l.b16 %v2424
    %v2496 = vunpack.c.l.b16 %v2425
    %v2497 = vunpack.c.l.b16 %v2426
    %v2498 = vunpack.c.l.b16 %v2427
    %v2499 = vunpack.c.l.b16 %v2428
    %v2500 = vunpack.c.l.b16 %v2429
    %v2501 = vpack.c.b16 %v2470, %v2469
    %v2502 = vpack.c.b16 %v2472, %v2471
    %v2503 = vpack.c.b16 %v2474, %v2473
    %v2504 = vpack.c.b16 %v2476, %v2475
    %v2505 = vpack.c.b16 %v2478, %v2477
    %v2506 = vpack.c.b16 %v2480, %v2479
    %v2507 = vpack.c.b16 %v2482, %v2481
    %v2508 = vpack.c.b16 %v2484, %v2483
    %v2509 = vpack.c.b16 %v2486, %v2485
    %v2510 = vpack.c.b16 %v2488, %v2487
    %v2511 = vpack.c.b16 %v2490, %v2489
    %v2512 = vpack.c.b16 %v2492, %v2491
    %v2513 = vpack.c.b16 %v2494, %v2493
    %v2514 = vpack.c.b16 %v2496, %v2495
    %v2515 = vpack.c.b16 %v2498, %v2497
    %v2516 = vpack.c.b16 %v2500, %v2499
    %2533 = vmatprep.subr.bf16.mxu0 0
    %2534 = vmatpush1.bf16.msra.mxu0 %v2501
    %2535 = vmatprep.subr.bf16.mxu0 0
    %2536 = vmatpush1.bf16.msra.mxu0 %v2502
    %2537 = vmatprep.subr.bf16.mxu0 0
    %2538 = vmatpush1.bf16.msra.mxu0 %v2503
    %2539 = vmatprep.subr.bf16.mxu0 0
    %2540 = vmatpush1.bf16.msra.mxu0 %v2504
    %2541 = vmatprep.subr.bf16.mxu0 0
    %2542 = vmatpush1.bf16.msra.mxu0 %v2505
    %2543 = vmatprep.subr.bf16.mxu0 0
    %2544 = vmatpush1.bf16.msra.mxu0 %v2506
    %2545 = vmatprep.subr.bf16.mxu0 0
    %2546 = vmatpush1.bf16.msra.mxu0 %v2507
    %2547 = vmatprep.subr.bf16.mxu0 0
    %2548 = vmatpush1.bf16.msra.mxu0 %v2508
    %2549 = vmatprep.subr.bf16.mxu0 0
    %2550 = vmatpush1.bf16.msra.mxu0 %v2509
    %2551 = vmatprep.subr.bf16.mxu0 0
    %2552 = vmatpush1.bf16.msra.mxu0 %v2510
    %2553 = vmatprep.subr.bf16.mxu0 0
    %2554 = vmatpush1.bf16.msra.mxu0 %v2511
    %2555 = vmatprep.subr.bf16.mxu0 0
    %2556 = vmatpush1.bf16.msra.mxu0 %v2512
    %2557 = vmatprep.subr.bf16.mxu0 0
    %2558 = vmatpush1.bf16.msra.mxu0 %v2513
    %2559 = vmatprep.subr.bf16.mxu0 0
    %2560 = vmatpush1.bf16.msra.mxu0 %v2514
    %2561 = vmatprep.subr.bf16.mxu0 0
    %2562 = vmatpush1.bf16.msra.mxu0 %v2515
    %2563 = vmatprep.subr.bf16.mxu0 0
    %2564 = vmatpush1.bf16.msra.mxu0 %v2516
    %2565 = vmatprep.mubr.bf16.mxu0 %v2393
    %2566 = vmatmul.mubr.bf16.gmra.mrb[0].mxu0 %v2392
    %v2567 = vpop.f32.mrb[0].mxu0
    %v2568 = vadd.f32 %v2435, %v2567
    %v2569 = vpop.f32.mrb[0].mxu0
    %v2570 = vpop.f32.mrb[0].mxu0
    %v2571 = vadd.f32 %v2435, %v2570
    %v2572 = vpop.f32.mrb[0].mxu0
    %2573 = vmatprep.mubr.bf16.mxu0 %v2395
    %2574 = vmatmul.mubr.bf16.gmra.mrb[0].mxu0 %v2394
    %v2575 = vpop.f32.mrb[0].mxu0
    %v2576 = vadd.f32 %v2435, %v2575
    %v2577 = vpop.f32.mrb[0].mxu0
    %v2578 = vpop.f32.mrb[0].mxu0
    %v2579 = vadd.f32 %v2435, %v2578
    %v2580 = vpop.f32.mrb[0].mxu0
    %2581 = vmatprep.mubr.bf16.mxu0 %v2397
    %2582 = vmatmul.mubr.bf16.gmra.mrb[0].mxu0 %v2396
    %v2583 = vpop.f32.mrb[0].mxu0
    %v2584 = vadd.f32 %v2435, %v2583
    %v2585 = vpop.f32.mrb[0].mxu0
    %v2586 = vpop.f32.mrb[0].mxu0
    %v2587 = vadd.f32 %v2435, %v2586
    %v2588 = vpop.f32.mrb[0].mxu0
    %2589 = vdwg.mxu0
    %v2590 = vmax.f32 %v2568, 0.0
    %v2591 = vmax.f32 %v2571, 0.0
    %v2592 = vmax.f32 %v2576, 0.0
    %v2593 = vmax.f32 %v2579, 0.0
    %v2594 = vmax.f32 %v2584, 0.0
    %v2595 = vmax.f32 %v2587, 0.0
    %v2596 = vpack.c.bf16 %v2591, %v2590
    %v2597 = vpack.c.bf16 %v2593, %v2592
    %v2598 = vpack.c.bf16 %v2595, %v2594
    %v2599 = vld [vmem:[%s7] sm:$0xf]
    %v2600 = vld [vmem:[%s7 + $0x4] sm:$0xf]
    %v2601 = vld [vmem:[%s7 + $0x8] sm:$0xf]
    %v2602 = vld [vmem:[%s7 + $0xc] sm:$0xf]
    %v2603 = vld [vmem:[%s7 + $0x10] sm:$0xf]
    %v2604 = vld [vmem:[%s7 + $0x14] sm:$0xf]
    %v2605 = vld [vmem:[%s7 + $0x18] sm:$0xf]
    %v2606 = vld [vmem:[%s7 + $0x1c] sm:$0xf]
    %v2607 = vld [vmem:[%s8] sm:$0x1]
    %v2609 = vlaneseq
    %v2610 = vshrl.u32 %v2609, 7
    %v2611 = vsub.s32 0, %v2610
    %v2612 = vrot.slane %v2607, %v2611
    %v2622 = vunpack.c.l.b16 %v2599
    %v2623 = vunpack.c.l.b16 %v2600
    %v2624 = vunpack.c.l.b16 %v2601
    %v2625 = vunpack.c.l.b16 %v2602
    %v2626 = vunpack.c.l.b16 %v2603
    %v2627 = vunpack.c.l.b16 %v2604
    %v2628 = vunpack.c.l.b16 %v2605
    %v2629 = vunpack.c.l.b16 %v2606
    %v2630 = vpack.c.b16 %v2623, %v2622
    %v2631 = vpack.c.b16 %v2625, %v2624
    %v2632 = vpack.c.b16 %v2627, %v2626
    %v2633 = vpack.c.b16 %v2629, %v2628
    %vm2638 = vcmask 523264
    %v2640 = vsel %vm2638, %v2596, 0
    %v2643 = vsel %vm2638, %v2597, 0
    %v2646 = vsel %vm2638, %v2598, 0
    %2648 = vmatprep.subr.bf16.mxu0 0
    %2649 = vmatpush1.bf16.msra.mxu0 %v2630
    %2650 = vmatprep.subr.bf16.mxu0 0
    %2651 = vmatpush1.bf16.msra.mxu0 %v2631
    %2652 = vmatprep.subr.bf16.mxu0 0
    %2653 = vmatpush1.bf16.msra.mxu0 %v2632
    %2654 = vmatprep.subr.bf16.mxu0 0
    %2655 = vmatpush1.bf16.msra.mxu0 %v2633
    %2656 = vmatprep.subr.bf16.mxu0 0
    %2657 = vmatpush1.bf16.msra.mxu0 0
    %2658 = vmatprep.subr.bf16.mxu0 0
    %2659 = vmatpush1.bf16.msra.mxu0 0
    %2660 = vmatprep.subr.bf16.mxu0 0
    %2661 = vmatpush1.bf16.msra.mxu0 0
    %2662 = vmatprep.subr.bf16.mxu0 0
    %2663 = vmatpush1.bf16.msra.mxu0 0
    %2664 = vmatprep.subr.bf16.mxu0 0
    %2665 = vmatpush1.bf16.msra.mxu0 0
    %2666 = vmatprep.subr.bf16.mxu0 0
    %2667 = vmatpush1.bf16.msra.mxu0 0
    %2668 = vmatprep.subr.bf16.mxu0 0
    %2669 = vmatpush1.bf16.msra.mxu0 0
    %2670 = vmatprep.subr.bf16.mxu0 0
    %2671 = vmatpush1.bf16.msra.mxu0 0
    %2672 = vmatprep.subr.bf16.mxu0 0
    %2673 = vmatpush1.bf16.msra.mxu0 0
    %2674 = vmatprep.subr.bf16.mxu0 0
    %2675 = vmatpush1.bf16.msra.mxu0 0
    %2676 = vmatprep.subr.bf16.mxu0 0
    %2677 = vmatpush1.bf16.msra.mxu0 0
    %2678 = vmatprep.subr.bf16.mxu0 0
    %2679 = vmatpush1.bf16.msra.mxu0 0
    %2680 = vmatprep.mubr.bf16.mxu0 0
    %2681 = vmatmul.mubr.bf16.gmra.mrb[0].mxu0 %v2640
    %v2682 = vpop.f32.mrb[0].mxu0
    %v2683 = vadd.f32 %v2612, %v2682
    %v2684 = vpop.f32.mrb[0].mxu0
    %v2685 = vpop.f32.mrb[0].mxu0
    %v2686 = vadd.f32 %v2612, %v2685
    %v2687 = vpop.f32.mrb[0].mxu0
    %2688 = vmatprep.mubr.bf16.mxu0 0
    %2689 = vmatmul.mubr.bf16.gmra.mrb[0].mxu0 %v2643
    %v2690 = vpop.f32.mrb[0].mxu0
    %v2691 = vadd.f32 %v2612, %v2690
    %v2692 = vpop.f32.mrb[0].mxu0
    %v2693 = vpop.f32.mrb[0].mxu0
    %v2694 = vadd.f32 %v2612, %v2693
    %v2695 = vpop.f32.mrb[0].mxu0
    %2696 = vmatprep.mubr.bf16.mxu0 0
    %2697 = vmatmul.mubr.bf16.gmra.mrb[0].mxu0 %v2646
    %v2698 = vpop.f32.mrb[0].mxu0
    %v2699 = vadd.f32 %v2612, %v2698
    %v2700 = vpop.f32.mrb[0].mxu0
    %v2701 = vpop.f32.mrb[0].mxu0
    %v2702 = vadd.f32 %v2612, %v2701
    %v2703 = vpop.f32.mrb[0].mxu0
    %2704 = vdwg.mxu0
    %vm2705 = vcmask 80896
    %2706 = vst.msk [vmem:[#allocation4] sm:$0xff] %vm2705, %v2683
    %2707 = vst.msk [vmem:[#allocation4 + $0x8] sm:$0xff] %vm2705, %v2686
    %2708 = vst.msk [vmem:[#allocation4 + $0x10] sm:$0xff] %vm2705, %v2691
    %2709 = vst.msk [vmem:[#allocation4 + $0x18] sm:$0xff] %vm2705, %v2694
    %2710 = vst.msk [vmem:[#allocation4 + $0x20] sm:$0xff] %vm2705, %v2699
    %2711 = vst.msk [vmem:[#allocation4 + $0x28] sm:$0xff] %vm2705, %v2702
    // Predicated region
    $region42: #{mlp_forward.1} parent=1 // pred_check
      _
    $region43: #{mlp_forward.1} parent=1 // pred_check_branch
      %2713 = sbr.rel (0) target = $region45
    $region44: #{mlp_forward.1} parent=1 // pred_region
      // Predicated region
      $region46: #{mlp_forward.1} parent=44 // pred_check
        _
      $region47: #{mlp_forward.1} parent=44 // pred_check_branch
        %2715 = sbr.rel (0) target = $region49
      $region48: #{mlp_forward.1} parent=44 // pred_region
        // Predicated region
        $region50: #{mlp_forward.1} parent=48 // pred_check
          _
        $region51: #{mlp_forward.1} parent=48 // pred_check_branch
          %2717 = sbr.rel (0) target = $region53
        $region52: #{mlp_forward.1} parent=48 // pred_region
          // Predicated region
          $region65: #{mlp_forward.1} parent=52 // pred_check
            _
          $region66: #{mlp_forward.1} parent=52 // pred_check_branch
            %2740 = sbr.rel (0) target = $region68
          $region67: #{mlp_forward.1} parent=52 // pred_region
            loop: start=0, step=1, limit=1
            $region69: #{mlp_forward.1} parent=67 // loop_pre_header
              _
            $region70: #{mlp_forward.1} parent=67 // loop_header
              %s2742 = sphi 0, %s2746
              %p2743 = scmp.ge.s32.totalorder %s2742, 1
              %s2747 = sphi [#allocation4], [#allocation4]
              %s2748 = sphi %s9, %s9
            $region71: #{mlp_forward.1} parent=67 // loop_header_branch
              %2745 = sbr.rel (%p2743) target = $region75
            $region72: #{mlp_forward.1} parent=67 // loop_body
              %v2749 = vld [vmem:[%s2747] sm:$0xff]
              %2750 = vst [vmem:[%s2748] sm:$0xff] %v2749
              %v2751 = vld [vmem:[%s2747 + $0x8] sm:$0xff]
              %2752 = vst [vmem:[%s2748 + $0x8] sm:$0xff] %v2751
              %v2753 = vld [vmem:[%s2747 + $0x10] sm:$0xff]
              %2754 = vst [vmem:[%s2748 + $0x10] sm:$0xff] %v2753
              %v2755 = vld [vmem:[%s2747 + $0x18] sm:$0xff]
              %2756 = vst [vmem:[%s2748 + $0x18] sm:$0xff] %v2755
              %v2757 = vld [vmem:[%s2747 + $0x20] sm:$0xff]
              %2758 = vst [vmem:[%s2748 + $0x20] sm:$0xff] %v2757
            $region73: #{mlp_forward.1} parent=67 // loop_footer
              %s2746 = sadd.s32 1, %s2742
            $region74: #{mlp_forward.1} parent=67 // loop_footer_branch
              %2741 = sbr.rel target = $region70
            $region75: #{mlp_forward.1} parent=67 // loop_exit
              _
          $region68: #{mlp_forward.1} parent=52 // pred_fallthru
            _
          // Predicated region
          $region76: #{mlp_forward.1} parent=52 // pred_check
            _
          $region77: #{mlp_forward.1} parent=52 // pred_check_branch
            %2760 = sbr.rel target = $region79
          $region78: #{mlp_forward.1} parent=52 // pred_region
            _
          $region79: #{mlp_forward.1} parent=52 // pred_fallthru
            _
        $region53: #{mlp_forward.1} parent=48 // pred_fallthru
          _
        // Predicated region
        $region54: #{mlp_forward.1} parent=48 // pred_check
          _
        $region55: #{mlp_forward.1} parent=48 // pred_check_branch
          %2719 = sbr.rel target = $region57
        $region56: #{mlp_forward.1} parent=48 // pred_region
          loop: start=0, step=1, limit=1
          $region58: #{mlp_forward.1} parent=56 // loop_pre_header
            _
          $region59: #{mlp_forward.1} parent=56 // loop_header
            %s2722 = sphi 0, %s2726
            %p2723 = scmp.ge.s32.totalorder %s2722, 1
            %s2727 = sphi [#allocation4], [#allocation4]
            %s2728 = sphi %s9, %s9
          $region60: #{mlp_forward.1} parent=56 // loop_header_branch
            %2725 = sbr.rel (%p2723) target = $region64
          $region61: #{mlp_forward.1} parent=56 // loop_body
            %v2729 = vld [vmem:[%s2727] sm:$0xff]
            %2730 = vst [vmem:[%s2728] sm:$0xff] %v2729
            %v2731 = vld [vmem:[%s2727 + $0x8] sm:$0xff]
            %2732 = vst [vmem:[%s2728 + $0x8] sm:$0xff] %v2731
            %v2733 = vld [vmem:[%s2727 + $0x10] sm:$0xff]
            %2734 = vst [vmem:[%s2728 + $0x10] sm:$0xff] %v2733
            %v2735 = vld [vmem:[%s2727 + $0x18] sm:$0xff]
            %2736 = vst [vmem:[%s2728 + $0x18] sm:$0xff] %v2735
            %v2737 = vld [vmem:[%s2727 + $0x20] sm:$0xff]
            %2738 = vst [vmem:[%s2728 + $0x20] sm:$0xff] %v2737
          $region62: #{mlp_forward.1} parent=56 // loop_footer
            %s2726 = sadd.s32 1, %s2722
          $region63: #{mlp_forward.1} parent=56 // loop_footer_branch
            %2721 = sbr.rel target = $region59
          $region64: #{mlp_forward.1} parent=56 // loop_exit
            _
        $region57: #{mlp_forward.1} parent=48 // pred_fallthru
          _
      $region49: #{mlp_forward.1} parent=44 // pred_fallthru
        _
      %2761 = vnop
    $region45: #{mlp_forward.1} parent=1 // pred_fallthru
      _
    // Predicated region
    $region80: #{mlp_forward.1} parent=1 // pred_check
      _
    $region81: #{mlp_forward.1} parent=1 // pred_check_branch
      %2763 = sbr.rel (0) target = $region83
    $region82: #{mlp_forward.1} parent=1 // pred_region
      _
    $region83: #{mlp_forward.1} parent=1 // pred_fallthru
      _
    %2764 = vsyncpa [#allocation3], 1

</llo_original>
